<compile_context>
chip_gen: v5e
topology: v5e:2x2
jax: 0.10.0
libtpu: 0.0.40
codegen_flags: <defaults>
</compile_context>

<pallas_src>
import jax
import jax.numpy as jnp
from jax.experimental import pallas as pl
from jax.experimental.pallas import tpu as pltpu

KH = KW = 3  # conv kernel size


def precip_head_kernel(w_ref, b_ref, halo_ref, x_ref, o_ref):
    """One (batch, H-tile) block per grid step, NCHW layout (W in lanes).

    w_ref:    SMEM (Cout*Cin*9,) f32 -- torch Conv2d weight (Cout,Cin,3,3), flat
    b_ref:    SMEM (Cout,)       f32 -- conv bias
    halo_ref: VMEM (1, 1, 2*Cin, W)  -- rows just above/below this H tile,
                                        interleaved [above_c0, below_c0, ...]
                                        (zeros at the global top/bottom rows)
    x_ref:    VMEM (1, Cin, TH, W)   -- backbone output tile
    o_ref:    VMEM (1, Cout, TH, W)  -- result tile
    """
    _, cin, th, tw = x_ref.shape
    cout = o_ref.shape[1]

    # Row masks used to splice halo rows into the sublane-rolled planes.
    row = jax.lax.broadcasted_iota(jnp.int32, (th, tw), 0)
    top = row == 0
    bot = row == th - 1

    hal = halo_ref[0, 0]            # (2*Cin, W)
    accs = [None] * cout

    for ci in range(cin):
        xc = x_ref[0, ci]                       # (TH, W), native dtype
        above = hal[2 * ci:2 * ci + 1]          # (1, W) row above this tile
        below = hal[2 * ci + 1:2 * ci + 2]      # (1, W) row below this tile

        # ky = 0 needs x[h-1]; ky = 2 needs x[h+1]; halo rows at tile edges.
        up = jnp.where(top, above, pltpu.roll(xc, shift=1, axis=0))
        dn = jnp.where(bot, below, pltpu.roll(xc, shift=th - 1, axis=0))

        for ky, base in enumerate((up, xc, dn)):
            # Circular longitude pad: tap column (w + kx - 1) mod W
            #   kx = 0 -> lane roll by 1, kx = 2 -> lane roll by W - 1.
            left = pltpu.roll(base, shift=1, axis=1)
            right = pltpu.roll(base, shift=tw - 1, axis=1)
            for co in range(cout):
                off = (co * cin + ci) * (KH * KW) + ky * KW
                contrib = (w_ref[off + 0] * left
                           + w_ref[off + 1] * base
                           + w_ref[off + 2] * right)
                if accs[co] is None:
                    accs[co] = b_ref[co] + contrib   # bias folded into 1st tap
                else:
                    accs[co] = accs[co] + contrib

    for co in range(cout):
        o_ref[0, co] = jnp.maximum(accs[co], 0.0).astype(o_ref.dtype)


def _pick_tile_h(h):
    """Largest H tile that is a multiple of 8, divides H and keeps the
    per-step VMEM working set comfortably under v7x's 64 MiB per-core budget
    (e.g. 720 -> 240: ~22 MiB of double-buffered blocks + ~14 MiB of live
    value planes at W = 1440, f32)."""
    if h <= 256:
        return h
    for th in range(256, 7, -8):
        if h % th == 0:
            return th
    # TODO(synk): H with no suitable divisor falls back to one un-tiled block.
    return h


def precipnet_forward(x_nchw, w_oihw, bias, backbone=None, tile_h=None):
    """Replicates PrecipNet.forward. x_nchw: (B, C, H, W) (NCHW, as in torch)."""
    x = x_nchw if backbone is None else backbone(x_nchw)

    B, C, H, W = x.shape
    Cout = w_oihw.shape[0]

    TH = _pick_tile_h(H) if tile_h is None else tile_h
    assert H % TH == 0, "tile_h must divide H"
    assert TH == H or TH % 8 == 0, "tile_h must be a multiple of 8 (sublanes)"
    nH = H // TH

    w_flat = w_oihw.astype(jnp.float32).reshape(-1)   # (Cout*Cin*9,)
    b = bias.astype(jnp.float32)                      # (Cout,)

    # Halo rows for every H tile: the row just above / just below each tile,
    # per channel.  Zeros at the global top/bottom realize PeriodicPad2d's
    # zero latitude pad; interior entries are real neighbour-tile rows so the
    # conv is exact across tile boundaries.
    zero_row = jnp.zeros((B, C, 1, W), x.dtype)
    above = jnp.concatenate([zero_row, x[:, :, TH - 1:H - 1:TH, :]], axis=2)
    below = jnp.concatenate([x[:, :, TH:H:TH, :], zero_row], axis=2)
    halo = jnp.stack([above, below], axis=3)                  # (B, C, nH, 2, W)
    halo = jnp.transpose(halo, (0, 2, 1, 3, 4)).reshape(B, nH, 2 * C, W)

    return pl.pallas_call(
        precip_head_kernel,
        out_shape=jax.ShapeDtypeStruct((B, Cout, H, W), x.dtype),
        grid_spec=pltpu.PrefetchScalarGridSpec(
            num_scalar_prefetch=0,
            grid=(B, nH),
            in_specs=[
                pl.BlockSpec(memory_space=pltpu.MemorySpace.SMEM),  # weights
                pl.BlockSpec(memory_space=pltpu.MemorySpace.SMEM),  # bias
                pl.BlockSpec((1, 1, 2 * C, W), lambda bb, tt: (bb, tt, 0, 0)),
                pl.BlockSpec((1, C, TH, W), lambda bb, tt: (bb, 0, tt, 0)),
            ],
            out_specs=pl.BlockSpec((1, Cout, TH, W),
                                   lambda bb, tt: (bb, 0, tt, 0)),
        ),
        compiler_params=pltpu.CompilerParams(
            dimension_semantics=("parallel", "parallel"),
            vmem_limit_bytes=48 * 1024 * 1024,   # > v5e/v6e defaults, < v7x 64 MiB
        ),
    )(w_flat, b, halo, x)


def _reference_forward(x_nchw, w_oihw, bias):
    """Plain-JAX reference (lax conv on NCHW) for verification."""
    # PeriodicPad2d(1): circular pad on W, then zero pad on H.
    xp = jnp.pad(x_nchw, ((0, 0), (0, 0), (0, 0), (1, 1)), mode="wrap")
    xp = jnp.pad(xp, ((0, 0), (0, 0), (1, 1), (0, 0)), mode="constant")
    y = jax.lax.conv_general_dilated(
        xp, w_oihw, window_strides=(1, 1), padding="VALID",
        dimension_numbers=("NCHW", "OIHW", "NCHW"))
    return jax.nn.relu(y + bias.reshape(1, -1, 1, 1))


if __name__ == "__main__":
    # Small shapes consistent with the module: params.N_out_channels = 4,
    # backbone output == (B, out_chans, H, W).  Correctness-only shapes.
    B, C, H, W = 2, 4, 16, 16

    key = jax.random.PRNGKey(0)
    kx, kw, kb = jax.random.split(key, 3)

    x = jax.random.normal(kx, (B, C, H, W), dtype=jnp.float32)

    # Deterministic Conv2d(out_chans, out_chans, 3) param init
    # (uniform with PyTorch-style bound 1/sqrt(fan_in)).
    fan_in = C * KH * KW
    bound = 1.0 / (fan_in ** 0.5)
    w_conv = jax.random.uniform(kw, (C, C, KH, KW), minval=-bound,
                                maxval=bound, dtype=jnp.float32)
    b_conv = jax.random.uniform(kb, (C,), minval=-bound, maxval=bound,
                                dtype=jnp.float32)

    ref = jax.block_until_ready(_reference_forward(x, w_conv, b_conv))

    # Multi-tile path: H = 16, TH = 8 exercises the inter-tile halo logic.
    out_tiled = jax.block_until_ready(
        precipnet_forward(x, w_conv, b_conv, tile_h=8))
    assert out_tiled.shape == (B, C, H, W)
    assert jnp.allclose(out_tiled, ref, rtol=1e-5, atol=1e-5), \
        "tiled kernel mismatch vs reference"

    # Default path: auto tile selection (single tile at this small H).
    out = jax.block_until_ready(precipnet_forward(x, w_conv, b_conv))
    assert jnp.allclose(out, ref, rtol=1e-5, atol=1e-5), \
        "kernel mismatch vs reference"

    print("KERNEL_OK")
</pallas_src>

<mosaic_0001>
module attributes {stable_mosaic.version = 11 : i64} {
  func.func @precip_head_kernel(%arg0: i32, %arg1: i32, %arg2: memref<144xf32, #tpu.memory_space<smem>>, %arg3: memref<4xf32, #tpu.memory_space<smem>>, %arg4: memref<1x1x8x16xf32, #tpu.memory_space<vmem>>, %arg5: memref<1x4x8x16xf32, #tpu.memory_space<vmem>>, %arg6: memref<1x4x8x16xf32, #tpu.memory_space<vmem>>) attributes {dimension_semantics = [#tpu.dimension_semantics<parallel>, #tpu.dimension_semantics<parallel>], iteration_bounds = array<i64: 2, 2>, scalar_prefetch = 0 : i64, scratch_operands = 0 : i64, tpu.core_type = #tpu.core_type<tc>, window_params = [{transform_indices = @transform_0, window_bounds = array<i64: 144>}, {transform_indices = @transform_1, window_bounds = array<i64: 4>}, {transform_indices = @transform_2, window_bounds = array<i64: 1, 1, 8, 16>}, {transform_indices = @transform_3, window_bounds = array<i64: 1, 4, 8, 16>}, {transform_indices = @transform_4, window_bounds = array<i64: 1, 4, 8, 16>}]} {
    %0 = tpu.iota {dimensions = array<i32: 0>} : vector<8x16xi32>
    %c0_i32 = arith.constant 0 : i32
    %1 = vector.broadcast %c0_i32 : i32 to vector<8x16xi32>
    %2 = arith.cmpi eq, %0, %1 : vector<8x16xi32>
    %c7_i32 = arith.constant 7 : i32
    %3 = vector.broadcast %c7_i32 : i32 to vector<8x16xi32>
    %4 = arith.cmpi eq, %0, %3 : vector<8x16xi32>
    %c0 = arith.constant 0 : index
    %c0_0 = arith.constant 0 : index
    %c0_1 = arith.constant 0 : index
    %c0_2 = arith.constant 0 : index
    %5 = vector.load %arg4[%c0, %c0_0, %c0_1, %c0_2] : memref<1x1x8x16xf32, #tpu.memory_space<vmem>>, vector<1x1x8x16xf32>
    %6 = vector.shape_cast %5 : vector<1x1x8x16xf32> to vector<8x16xf32>
    %c0_3 = arith.constant 0 : index
    %c0_4 = arith.constant 0 : index
    %c0_5 = arith.constant 0 : index
    %c0_6 = arith.constant 0 : index
    %7 = vector.load %arg5[%c0_3, %c0_4, %c0_5, %c0_6] : memref<1x4x8x16xf32, #tpu.memory_space<vmem>>, vector<1x1x8x16xf32>
    %8 = vector.shape_cast %7 : vector<1x1x8x16xf32> to vector<8x16xf32>
    %9 = vector.extract_strided_slice %6 {offsets = [0, 0], sizes = [1, 16], strides = [1, 1]} : vector<8x16xf32> to vector<1x16xf32>
    %10 = vector.extract_strided_slice %6 {offsets = [1, 0], sizes = [1, 16], strides = [1, 1]} : vector<8x16xf32> to vector<1x16xf32>
    %c1_i32 = arith.constant 1 : i32
    %11 = tpu.dynamic_rotate %8 by %c1_i32 dim 0 : vector<8x16xf32>, i32 -> vector<8x16xf32>
    %12 = vector.shape_cast %9 : vector<1x16xf32> to vector<1x16xf32>
    %13 = vector.broadcast %12 : vector<1x16xf32> to vector<8x16xf32>
    %14 = arith.select %2, %13, %11 : vector<8x16xi1>, vector<8x16xf32>
    %c7_i32_7 = arith.constant 7 : i32
    %15 = tpu.dynamic_rotate %8 by %c7_i32_7 dim 0 : vector<8x16xf32>, i32 -> vector<8x16xf32>
    %16 = vector.shape_cast %10 : vector<1x16xf32> to vector<1x16xf32>
    %17 = vector.broadcast %16 : vector<1x16xf32> to vector<8x16xf32>
    %18 = arith.select %4, %17, %15 : vector<8x16xi1>, vector<8x16xf32>
    %c1_i32_8 = arith.constant 1 : i32
    %19 = tpu.dynamic_rotate %14 by %c1_i32_8 dim 1 : vector<8x16xf32>, i32 -> vector<8x16xf32>
    %c15_i32 = arith.constant 15 : i32
    %20 = tpu.dynamic_rotate %14 by %c15_i32 dim 1 : vector<8x16xf32>, i32 -> vector<8x16xf32>
    %c0_9 = arith.constant 0 : index
    %21 = memref.load %arg2[%c0_9] : memref<144xf32, #tpu.memory_space<smem>>
    %22 = vector.broadcast %21 : f32 to vector<8x16xf32>
    %23 = arith.mulf %22, %19 : vector<8x16xf32>
    %c1 = arith.constant 1 : index
    %24 = memref.load %arg2[%c1] : memref<144xf32, #tpu.memory_space<smem>>
    %25 = vector.broadcast %24 : f32 to vector<8x16xf32>
    %26 = arith.mulf %25, %14 : vector<8x16xf32>
    %27 = arith.addf %23, %26 : vector<8x16xf32>
    %c2 = arith.constant 2 : index
    %28 = memref.load %arg2[%c2] : memref<144xf32, #tpu.memory_space<smem>>
    %29 = vector.broadcast %28 : f32 to vector<8x16xf32>
    %30 = arith.mulf %29, %20 : vector<8x16xf32>
    %31 = arith.addf %27, %30 : vector<8x16xf32>
    %c0_10 = arith.constant 0 : index
    %32 = memref.load %arg3[%c0_10] : memref<4xf32, #tpu.memory_space<smem>>
    %33 = vector.broadcast %32 : f32 to vector<8x16xf32>
    %34 = arith.addf %33, %31 : vector<8x16xf32>
    %c36 = arith.constant 36 : index
    %35 = memref.load %arg2[%c36] : memref<144xf32, #tpu.memory_space<smem>>
    %36 = vector.broadcast %35 : f32 to vector<8x16xf32>
    %37 = arith.mulf %36, %19 : vector<8x16xf32>
    %c37 = arith.constant 37 : index
    %38 = memref.load %arg2[%c37] : memref<144xf32, #tpu.memory_space<smem>>
    %39 = vector.broadcast %38 : f32 to vector<8x16xf32>
    %40 = arith.mulf %39, %14 : vector<8x16xf32>
    %41 = arith.addf %37, %40 : vector<8x16xf32>
    %c38 = arith.constant 38 : index
    %42 = memref.load %arg2[%c38] : memref<144xf32, #tpu.memory_space<smem>>
    %43 = vector.broadcast %42 : f32 to vector<8x16xf32>
    %44 = arith.mulf %43, %20 : vector<8x16xf32>
    %45 = arith.addf %41, %44 : vector<8x16xf32>
    %c1_11 = arith.constant 1 : index
    %46 = memref.load %arg3[%c1_11] : memref<4xf32, #tpu.memory_space<smem>>
    %47 = vector.broadcast %46 : f32 to vector<8x16xf32>
    %48 = arith.addf %47, %45 : vector<8x16xf32>
    %c72 = arith.constant 72 : index
    %49 = memref.load %arg2[%c72] : memref<144xf32, #tpu.memory_space<smem>>
    %50 = vector.broadcast %49 : f32 to vector<8x16xf32>
    %51 = arith.mulf %50, %19 : vector<8x16xf32>
    %c73 = arith.constant 73 : index
    %52 = memref.load %arg2[%c73] : memref<144xf32, #tpu.memory_space<smem>>
    %53 = vector.broadcast %52 : f32 to vector<8x16xf32>
    %54 = arith.mulf %53, %14 : vector<8x16xf32>
    %55 = arith.addf %51, %54 : vector<8x16xf32>
    %c74 = arith.constant 74 : index
    %56 = memref.load %arg2[%c74] : memref<144xf32, #tpu.memory_space<smem>>
    %57 = vector.broadcast %56 : f32 to vector<8x16xf32>
    %58 = arith.mulf %57, %20 : vector<8x16xf32>
    %59 = arith.addf %55, %58 : vector<8x16xf32>
    %c2_12 = arith.constant 2 : index
    %60 = memref.load %arg3[%c2_12] : memref<4xf32, #tpu.memory_space<smem>>
    %61 = vector.broadcast %60 : f32 to vector<8x16xf32>
    %62 = arith.addf %61, %59 : vector<8x16xf32>
    %c108 = arith.constant 108 : index
    %63 = memref.load %arg2[%c108] : memref<144xf32, #tpu.memory_space<smem>>
    %64 = vector.broadcast %63 : f32 to vector<8x16xf32>
    %65 = arith.mulf %64, %19 : vector<8x16xf32>
    %c109 = arith.constant 109 : index
    %66 = memref.load %arg2[%c109] : memref<144xf32, #tpu.memory_space<smem>>
    %67 = vector.broadcast %66 : f32 to vector<8x16xf32>
    %68 = arith.mulf %67, %14 : vector<8x16xf32>
    %69 = arith.addf %65, %68 : vector<8x16xf32>
    %c110 = arith.constant 110 : index
    %70 = memref.load %arg2[%c110] : memref<144xf32, #tpu.memory_space<smem>>
    %71 = vector.broadcast %70 : f32 to vector<8x16xf32>
    %72 = arith.mulf %71, %20 : vector<8x16xf32>
    %73 = arith.addf %69, %72 : vector<8x16xf32>
    %c3 = arith.constant 3 : index
    %74 = memref.load %arg3[%c3] : memref<4xf32, #tpu.memory_space<smem>>
    %75 = vector.broadcast %74 : f32 to vector<8x16xf32>
    %76 = arith.addf %75, %73 : vector<8x16xf32>
    %c1_i32_13 = arith.constant 1 : i32
    %77 = tpu.dynamic_rotate %8 by %c1_i32_13 dim 1 : vector<8x16xf32>, i32 -> vector<8x16xf32>
    %c15_i32_14 = arith.constant 15 : i32
    %78 = tpu.dynamic_rotate %8 by %c15_i32_14 dim 1 : vector<8x16xf32>, i32 -> vector<8x16xf32>
    %c3_15 = arith.constant 3 : index
    %79 = memref.load %arg2[%c3_15] : memref<144xf32, #tpu.memory_space<smem>>
    %80 = vector.broadcast %79 : f32 to vector<8x16xf32>
    %81 = arith.mulf %80, %77 : vector<8x16xf32>
    %c4 = arith.constant 4 : index
    %82 = memref.load %arg2[%c4] : memref<144xf32, #tpu.memory_space<smem>>
    %83 = vector.broadcast %82 : f32 to vector<8x16xf32>
    %84 = arith.mulf %83, %8 : vector<8x16xf32>
    %85 = arith.addf %81, %84 : vector<8x16xf32>
    %c5 = arith.constant 5 : index
    %86 = memref.load %arg2[%c5] : memref<144xf32, #tpu.memory_space<smem>>
    %87 = vector.broadcast %86 : f32 to vector<8x16xf32>
    %88 = arith.mulf %87, %78 : vector<8x16xf32>
    %89 = arith.addf %85, %88 : vector<8x16xf32>
    %90 = arith.addf %34, %89 : vector<8x16xf32>
    %c39 = arith.constant 39 : index
    %91 = memref.load %arg2[%c39] : memref<144xf32, #tpu.memory_space<smem>>
    %92 = vector.broadcast %91 : f32 to vector<8x16xf32>
    %93 = arith.mulf %92, %77 : vector<8x16xf32>
    %c40 = arith.constant 40 : index
    %94 = memref.load %arg2[%c40] : memref<144xf32, #tpu.memory_space<smem>>
    %95 = vector.broadcast %94 : f32 to vector<8x16xf32>
    %96 = arith.mulf %95, %8 : vector<8x16xf32>
    %97 = arith.addf %93, %96 : vector<8x16xf32>
    %c41 = arith.constant 41 : index
    %98 = memref.load %arg2[%c41] : memref<144xf32, #tpu.memory_space<smem>>
    %99 = vector.broadcast %98 : f32 to vector<8x16xf32>
    %100 = arith.mulf %99, %78 : vector<8x16xf32>
    %101 = arith.addf %97, %100 : vector<8x16xf32>
    %102 = arith.addf %48, %101 : vector<8x16xf32>
    %c75 = arith.constant 75 : index
    %103 = memref.load %arg2[%c75] : memref<144xf32, #tpu.memory_space<smem>>
    %104 = vector.broadcast %103 : f32 to vector<8x16xf32>
    %105 = arith.mulf %104, %77 : vector<8x16xf32>
    %c76 = arith.constant 76 : index
    %106 = memref.load %arg2[%c76] : memref<144xf32, #tpu.memory_space<smem>>
    %107 = vector.broadcast %106 : f32 to vector<8x16xf32>
    %108 = arith.mulf %107, %8 : vector<8x16xf32>
    %109 = arith.addf %105, %108 : vector<8x16xf32>
    %c77 = arith.constant 77 : index
    %110 = memref.load %arg2[%c77] : memref<144xf32, #tpu.memory_space<smem>>
    %111 = vector.broadcast %110 : f32 to vector<8x16xf32>
    %112 = arith.mulf %111, %78 : vector<8x16xf32>
    %113 = arith.addf %109, %112 : vector<8x16xf32>
    %114 = arith.addf %62, %113 : vector<8x16xf32>
    %c111 = arith.constant 111 : index
    %115 = memref.load %arg2[%c111] : memref<144xf32, #tpu.memory_space<smem>>
    %116 = vector.broadcast %115 : f32 to vector<8x16xf32>
    %117 = arith.mulf %116, %77 : vector<8x16xf32>
    %c112 = arith.constant 112 : index
    %118 = memref.load %arg2[%c112] : memref<144xf32, #tpu.memory_space<smem>>
    %119 = vector.broadcast %118 : f32 to vector<8x16xf32>
    %120 = arith.mulf %119, %8 : vector<8x16xf32>
    %121 = arith.addf %117, %120 : vector<8x16xf32>
    %c113 = arith.constant 113 : index
    %122 = memref.load %arg2[%c113] : memref<144xf32, #tpu.memory_space<smem>>
    %123 = vector.broadcast %122 : f32 to vector<8x16xf32>
    %124 = arith.mulf %123, %78 : vector<8x16xf32>
    %125 = arith.addf %121, %124 : vector<8x16xf32>
    %126 = arith.addf %76, %125 : vector<8x16xf32>
    %c1_i32_16 = arith.constant 1 : i32
    %127 = tpu.dynamic_rotate %18 by %c1_i32_16 dim 1 : vector<8x16xf32>, i32 -> vector<8x16xf32>
    %c15_i32_17 = arith.constant 15 : i32
    %128 = tpu.dynamic_rotate %18 by %c15_i32_17 dim 1 : vector<8x16xf32>, i32 -> vector<8x16xf32>
    %c6 = arith.constant 6 : index
    %129 = memref.load %arg2[%c6] : memref<144xf32, #tpu.memory_space<smem>>
    %130 = vector.broadcast %129 : f32 to vector<8x16xf32>
    %131 = arith.mulf %130, %127 : vector<8x16xf32>
    %c7 = arith.constant 7 : index
    %132 = memref.load %arg2[%c7] : memref<144xf32, #tpu.memory_space<smem>>
    %133 = vector.broadcast %132 : f32 to vector<8x16xf32>
    %134 = arith.mulf %133, %18 : vector<8x16xf32>
    %135 = arith.addf %131, %134 : vector<8x16xf32>
    %c8 = arith.constant 8 : index
    %136 = memref.load %arg2[%c8] : memref<144xf32, #tpu.memory_space<smem>>
    %137 = vector.broadcast %136 : f32 to vector<8x16xf32>
    %138 = arith.mulf %137, %128 : vector<8x16xf32>
    %139 = arith.addf %135, %138 : vector<8x16xf32>
    %140 = arith.addf %90, %139 : vector<8x16xf32>
    %c42 = arith.constant 42 : index
    %141 = memref.load %arg2[%c42] : memref<144xf32, #tpu.memory_space<smem>>
    %142 = vector.broadcast %141 : f32 to vector<8x16xf32>
    %143 = arith.mulf %142, %127 : vector<8x16xf32>
    %c43 = arith.constant 43 : index
    %144 = memref.load %arg2[%c43] : memref<144xf32, #tpu.memory_space<smem>>
    %145 = vector.broadcast %144 : f32 to vector<8x16xf32>
    %146 = arith.mulf %145, %18 : vector<8x16xf32>
    %147 = arith.addf %143, %146 : vector<8x16xf32>
    %c44 = arith.constant 44 : index
    %148 = memref.load %arg2[%c44] : memref<144xf32, #tpu.memory_space<smem>>
    %149 = vector.broadcast %148 : f32 to vector<8x16xf32>
    %150 = arith.mulf %149, %128 : vector<8x16xf32>
    %151 = arith.addf %147, %150 : vector<8x16xf32>
    %152 = arith.addf %102, %151 : vector<8x16xf32>
    %c78 = arith.constant 78 : index
    %153 = memref.load %arg2[%c78] : memref<144xf32, #tpu.memory_space<smem>>
    %154 = vector.broadcast %153 : f32 to vector<8x16xf32>
    %155 = arith.mulf %154, %127 : vector<8x16xf32>
    %c79 = arith.constant 79 : index
    %156 = memref.load %arg2[%c79] : memref<144xf32, #tpu.memory_space<smem>>
    %157 = vector.broadcast %156 : f32 to vector<8x16xf32>
    %158 = arith.mulf %157, %18 : vector<8x16xf32>
    %159 = arith.addf %155, %158 : vector<8x16xf32>
    %c80 = arith.constant 80 : index
    %160 = memref.load %arg2[%c80] : memref<144xf32, #tpu.memory_space<smem>>
    %161 = vector.broadcast %160 : f32 to vector<8x16xf32>
    %162 = arith.mulf %161, %128 : vector<8x16xf32>
    %163 = arith.addf %159, %162 : vector<8x16xf32>
    %164 = arith.addf %114, %163 : vector<8x16xf32>
    %c114 = arith.constant 114 : index
    %165 = memref.load %arg2[%c114] : memref<144xf32, #tpu.memory_space<smem>>
    %166 = vector.broadcast %165 : f32 to vector<8x16xf32>
    %167 = arith.mulf %166, %127 : vector<8x16xf32>
    %c115 = arith.constant 115 : index
    %168 = memref.load %arg2[%c115] : memref<144xf32, #tpu.memory_space<smem>>
    %169 = vector.broadcast %168 : f32 to vector<8x16xf32>
    %170 = arith.mulf %169, %18 : vector<8x16xf32>
    %171 = arith.addf %167, %170 : vector<8x16xf32>
    %c116 = arith.constant 116 : index
    %172 = memref.load %arg2[%c116] : memref<144xf32, #tpu.memory_space<smem>>
    %173 = vector.broadcast %172 : f32 to vector<8x16xf32>
    %174 = arith.mulf %173, %128 : vector<8x16xf32>
    %175 = arith.addf %171, %174 : vector<8x16xf32>
    %176 = arith.addf %126, %175 : vector<8x16xf32>
    %c0_18 = arith.constant 0 : index
    %c1_19 = arith.constant 1 : index
    %c0_20 = arith.constant 0 : index
    %c0_21 = arith.constant 0 : index
    %177 = vector.load %arg5[%c0_18, %c1_19, %c0_20, %c0_21] : memref<1x4x8x16xf32, #tpu.memory_space<vmem>>, vector<1x1x8x16xf32>
    %178 = vector.shape_cast %177 : vector<1x1x8x16xf32> to vector<8x16xf32>
    %179 = vector.extract_strided_slice %6 {offsets = [2, 0], sizes = [1, 16], strides = [1, 1]} : vector<8x16xf32> to vector<1x16xf32>
    %180 = vector.extract_strided_slice %6 {offsets = [3, 0], sizes = [1, 16], strides = [1, 1]} : vector<8x16xf32> to vector<1x16xf32>
    %c1_i32_22 = arith.constant 1 : i32
    %181 = tpu.dynamic_rotate %178 by %c1_i32_22 dim 0 : vector<8x16xf32>, i32 -> vector<8x16xf32>
    %182 = vector.shape_cast %179 : vector<1x16xf32> to vector<1x16xf32>
    %183 = vector.broadcast %182 : vector<1x16xf32> to vector<8x16xf32>
    %184 = arith.select %2, %183, %181 : vector<8x16xi1>, vector<8x16xf32>
    %c7_i32_23 = arith.constant 7 : i32
    %185 = tpu.dynamic_rotate %178 by %c7_i32_23 dim 0 : vector<8x16xf32>, i32 -> vector<8x16xf32>
    %186 = vector.shape_cast %180 : vector<1x16xf32> to vector<1x16xf32>
    %187 = vector.broadcast %186 : vector<1x16xf32> to vector<8x16xf32>
    %188 = arith.select %4, %187, %185 : vector<8x16xi1>, vector<8x16xf32>
    %c1_i32_24 = arith.constant 1 : i32
    %189 = tpu.dynamic_rotate %184 by %c1_i32_24 dim 1 : vector<8x16xf32>, i32 -> vector<8x16xf32>
    %c15_i32_25 = arith.constant 15 : i32
    %190 = tpu.dynamic_rotate %184 by %c15_i32_25 dim 1 : vector<8x16xf32>, i32 -> vector<8x16xf32>
    %c9 = arith.constant 9 : index
    %191 = memref.load %arg2[%c9] : memref<144xf32, #tpu.memory_space<smem>>
    %192 = vector.broadcast %191 : f32 to vector<8x16xf32>
    %193 = arith.mulf %192, %189 : vector<8x16xf32>
    %c10 = arith.constant 10 : index
    %194 = memref.load %arg2[%c10] : memref<144xf32, #tpu.memory_space<smem>>
    %195 = vector.broadcast %194 : f32 to vector<8x16xf32>
    %196 = arith.mulf %195, %184 : vector<8x16xf32>
    %197 = arith.addf %193, %196 : vector<8x16xf32>
    %c11 = arith.constant 11 : index
    %198 = memref.load %arg2[%c11] : memref<144xf32, #tpu.memory_space<smem>>
    %199 = vector.broadcast %198 : f32 to vector<8x16xf32>
    %200 = arith.mulf %199, %190 : vector<8x16xf32>
    %201 = arith.addf %197, %200 : vector<8x16xf32>
    %202 = arith.addf %140, %201 : vector<8x16xf32>
    %c45 = arith.constant 45 : index
    %203 = memref.load %arg2[%c45] : memref<144xf32, #tpu.memory_space<smem>>
    %204 = vector.broadcast %203 : f32 to vector<8x16xf32>
    %205 = arith.mulf %204, %189 : vector<8x16xf32>
    %c46 = arith.constant 46 : index
    %206 = memref.load %arg2[%c46] : memref<144xf32, #tpu.memory_space<smem>>
    %207 = vector.broadcast %206 : f32 to vector<8x16xf32>
    %208 = arith.mulf %207, %184 : vector<8x16xf32>
    %209 = arith.addf %205, %208 : vector<8x16xf32>
    %c47 = arith.constant 47 : index
    %210 = memref.load %arg2[%c47] : memref<144xf32, #tpu.memory_space<smem>>
    %211 = vector.broadcast %210 : f32 to vector<8x16xf32>
    %212 = arith.mulf %211, %190 : vector<8x16xf32>
    %213 = arith.addf %209, %212 : vector<8x16xf32>
    %214 = arith.addf %152, %213 : vector<8x16xf32>
    %c81 = arith.constant 81 : index
    %215 = memref.load %arg2[%c81] : memref<144xf32, #tpu.memory_space<smem>>
    %216 = vector.broadcast %215 : f32 to vector<8x16xf32>
    %217 = arith.mulf %216, %189 : vector<8x16xf32>
    %c82 = arith.constant 82 : index
    %218 = memref.load %arg2[%c82] : memref<144xf32, #tpu.memory_space<smem>>
    %219 = vector.broadcast %218 : f32 to vector<8x16xf32>
    %220 = arith.mulf %219, %184 : vector<8x16xf32>
    %221 = arith.addf %217, %220 : vector<8x16xf32>
    %c83 = arith.constant 83 : index
    %222 = memref.load %arg2[%c83] : memref<144xf32, #tpu.memory_space<smem>>
    %223 = vector.broadcast %222 : f32 to vector<8x16xf32>
    %224 = arith.mulf %223, %190 : vector<8x16xf32>
    %225 = arith.addf %221, %224 : vector<8x16xf32>
    %226 = arith.addf %164, %225 : vector<8x16xf32>
    %c117 = arith.constant 117 : index
    %227 = memref.load %arg2[%c117] : memref<144xf32, #tpu.memory_space<smem>>
    %228 = vector.broadcast %227 : f32 to vector<8x16xf32>
    %229 = arith.mulf %228, %189 : vector<8x16xf32>
    %c118 = arith.constant 118 : index
    %230 = memref.load %arg2[%c118] : memref<144xf32, #tpu.memory_space<smem>>
    %231 = vector.broadcast %230 : f32 to vector<8x16xf32>
    %232 = arith.mulf %231, %184 : vector<8x16xf32>
    %233 = arith.addf %229, %232 : vector<8x16xf32>
    %c119 = arith.constant 119 : index
    %234 = memref.load %arg2[%c119] : memref<144xf32, #tpu.memory_space<smem>>
    %235 = vector.broadcast %234 : f32 to vector<8x16xf32>
    %236 = arith.mulf %235, %190 : vector<8x16xf32>
    %237 = arith.addf %233, %236 : vector<8x16xf32>
    %238 = arith.addf %176, %237 : vector<8x16xf32>
    %c1_i32_26 = arith.constant 1 : i32
    %239 = tpu.dynamic_rotate %178 by %c1_i32_26 dim 1 : vector<8x16xf32>, i32 -> vector<8x16xf32>
    %c15_i32_27 = arith.constant 15 : i32
    %240 = tpu.dynamic_rotate %178 by %c15_i32_27 dim 1 : vector<8x16xf32>, i32 -> vector<8x16xf32>
    %c12 = arith.constant 12 : index
    %241 = memref.load %arg2[%c12] : memref<144xf32, #tpu.memory_space<smem>>
    %242 = vector.broadcast %241 : f32 to vector<8x16xf32>
    %243 = arith.mulf %242, %239 : vector<8x16xf32>
    %c13 = arith.constant 13 : index
    %244 = memref.load %arg2[%c13] : memref<144xf32, #tpu.memory_space<smem>>
    %245 = vector.broadcast %244 : f32 to vector<8x16xf32>
    %246 = arith.mulf %245, %178 : vector<8x16xf32>
    %247 = arith.addf %243, %246 : vector<8x16xf32>
    %c14 = arith.constant 14 : index
    %248 = memref.load %arg2[%c14] : memref<144xf32, #tpu.memory_space<smem>>
    %249 = vector.broadcast %248 : f32 to vector<8x16xf32>
    %250 = arith.mulf %249, %240 : vector<8x16xf32>
    %251 = arith.addf %247, %250 : vector<8x16xf32>
    %252 = arith.addf %202, %251 : vector<8x16xf32>
    %c48 = arith.constant 48 : index
    %253 = memref.load %arg2[%c48] : memref<144xf32, #tpu.memory_space<smem>>
    %254 = vector.broadcast %253 : f32 to vector<8x16xf32>
    %255 = arith.mulf %254, %239 : vector<8x16xf32>
    %c49 = arith.constant 49 : index
    %256 = memref.load %arg2[%c49] : memref<144xf32, #tpu.memory_space<smem>>
    %257 = vector.broadcast %256 : f32 to vector<8x16xf32>
    %258 = arith.mulf %257, %178 : vector<8x16xf32>
    %259 = arith.addf %255, %258 : vector<8x16xf32>
    %c50 = arith.constant 50 : index
    %260 = memref.load %arg2[%c50] : memref<144xf32, #tpu.memory_space<smem>>
    %261 = vector.broadcast %260 : f32 to vector<8x16xf32>
    %262 = arith.mulf %261, %240 : vector<8x16xf32>
    %263 = arith.addf %259, %262 : vector<8x16xf32>
    %264 = arith.addf %214, %263 : vector<8x16xf32>
    %c84 = arith.constant 84 : index
    %265 = memref.load %arg2[%c84] : memref<144xf32, #tpu.memory_space<smem>>
    %266 = vector.broadcast %265 : f32 to vector<8x16xf32>
    %267 = arith.mulf %266, %239 : vector<8x16xf32>
    %c85 = arith.constant 85 : index
    %268 = memref.load %arg2[%c85] : memref<144xf32, #tpu.memory_space<smem>>
    %269 = vector.broadcast %268 : f32 to vector<8x16xf32>
    %270 = arith.mulf %269, %178 : vector<8x16xf32>
    %271 = arith.addf %267, %270 : vector<8x16xf32>
    %c86 = arith.constant 86 : index
    %272 = memref.load %arg2[%c86] : memref<144xf32, #tpu.memory_space<smem>>
    %273 = vector.broadcast %272 : f32 to vector<8x16xf32>
    %274 = arith.mulf %273, %240 : vector<8x16xf32>
    %275 = arith.addf %271, %274 : vector<8x16xf32>
    %276 = arith.addf %226, %275 : vector<8x16xf32>
    %c120 = arith.constant 120 : index
    %277 = memref.load %arg2[%c120] : memref<144xf32, #tpu.memory_space<smem>>
    %278 = vector.broadcast %277 : f32 to vector<8x16xf32>
    %279 = arith.mulf %278, %239 : vector<8x16xf32>
    %c121 = arith.constant 121 : index
    %280 = memref.load %arg2[%c121] : memref<144xf32, #tpu.memory_space<smem>>
    %281 = vector.broadcast %280 : f32 to vector<8x16xf32>
    %282 = arith.mulf %281, %178 : vector<8x16xf32>
    %283 = arith.addf %279, %282 : vector<8x16xf32>
    %c122 = arith.constant 122 : index
    %284 = memref.load %arg2[%c122] : memref<144xf32, #tpu.memory_space<smem>>
    %285 = vector.broadcast %284 : f32 to vector<8x16xf32>
    %286 = arith.mulf %285, %240 : vector<8x16xf32>
    %287 = arith.addf %283, %286 : vector<8x16xf32>
    %288 = arith.addf %238, %287 : vector<8x16xf32>
    %c1_i32_28 = arith.constant 1 : i32
    %289 = tpu.dynamic_rotate %188 by %c1_i32_28 dim 1 : vector<8x16xf32>, i32 -> vector<8x16xf32>
    %c15_i32_29 = arith.constant 15 : i32
    %290 = tpu.dynamic_rotate %188 by %c15_i32_29 dim 1 : vector<8x16xf32>, i32 -> vector<8x16xf32>
    %c15 = arith.constant 15 : index
    %291 = memref.load %arg2[%c15] : memref<144xf32, #tpu.memory_space<smem>>
    %292 = vector.broadcast %291 : f32 to vector<8x16xf32>
    %293 = arith.mulf %292, %289 : vector<8x16xf32>
    %c16 = arith.constant 16 : index
    %294 = memref.load %arg2[%c16] : memref<144xf32, #tpu.memory_space<smem>>
    %295 = vector.broadcast %294 : f32 to vector<8x16xf32>
    %296 = arith.mulf %295, %188 : vector<8x16xf32>
    %297 = arith.addf %293, %296 : vector<8x16xf32>
    %c17 = arith.constant 17 : index
    %298 = memref.load %arg2[%c17] : memref<144xf32, #tpu.memory_space<smem>>
    %299 = vector.broadcast %298 : f32 to vector<8x16xf32>
    %300 = arith.mulf %299, %290 : vector<8x16xf32>
    %301 = arith.addf %297, %300 : vector<8x16xf32>
    %302 = arith.addf %252, %301 : vector<8x16xf32>
    %c51 = arith.constant 51 : index
    %303 = memref.load %arg2[%c51] : memref<144xf32, #tpu.memory_space<smem>>
    %304 = vector.broadcast %303 : f32 to vector<8x16xf32>
    %305 = arith.mulf %304, %289 : vector<8x16xf32>
    %c52 = arith.constant 52 : index
    %306 = memref.load %arg2[%c52] : memref<144xf32, #tpu.memory_space<smem>>
    %307 = vector.broadcast %306 : f32 to vector<8x16xf32>
    %308 = arith.mulf %307, %188 : vector<8x16xf32>
    %309 = arith.addf %305, %308 : vector<8x16xf32>
    %c53 = arith.constant 53 : index
    %310 = memref.load %arg2[%c53] : memref<144xf32, #tpu.memory_space<smem>>
    %311 = vector.broadcast %310 : f32 to vector<8x16xf32>
    %312 = arith.mulf %311, %290 : vector<8x16xf32>
    %313 = arith.addf %309, %312 : vector<8x16xf32>
    %314 = arith.addf %264, %313 : vector<8x16xf32>
    %c87 = arith.constant 87 : index
    %315 = memref.load %arg2[%c87] : memref<144xf32, #tpu.memory_space<smem>>
    %316 = vector.broadcast %315 : f32 to vector<8x16xf32>
    %317 = arith.mulf %316, %289 : vector<8x16xf32>
    %c88 = arith.constant 88 : index
    %318 = memref.load %arg2[%c88] : memref<144xf32, #tpu.memory_space<smem>>
    %319 = vector.broadcast %318 : f32 to vector<8x16xf32>
    %320 = arith.mulf %319, %188 : vector<8x16xf32>
    %321 = arith.addf %317, %320 : vector<8x16xf32>
    %c89 = arith.constant 89 : index
    %322 = memref.load %arg2[%c89] : memref<144xf32, #tpu.memory_space<smem>>
    %323 = vector.broadcast %322 : f32 to vector<8x16xf32>
    %324 = arith.mulf %323, %290 : vector<8x16xf32>
    %325 = arith.addf %321, %324 : vector<8x16xf32>
    %326 = arith.addf %276, %325 : vector<8x16xf32>
    %c123 = arith.constant 123 : index
    %327 = memref.load %arg2[%c123] : memref<144xf32, #tpu.memory_space<smem>>
    %328 = vector.broadcast %327 : f32 to vector<8x16xf32>
    %329 = arith.mulf %328, %289 : vector<8x16xf32>
    %c124 = arith.constant 124 : index
    %330 = memref.load %arg2[%c124] : memref<144xf32, #tpu.memory_space<smem>>
    %331 = vector.broadcast %330 : f32 to vector<8x16xf32>
    %332 = arith.mulf %331, %188 : vector<8x16xf32>
    %333 = arith.addf %329, %332 : vector<8x16xf32>
    %c125 = arith.constant 125 : index
    %334 = memref.load %arg2[%c125] : memref<144xf32, #tpu.memory_space<smem>>
    %335 = vector.broadcast %334 : f32 to vector<8x16xf32>
    %336 = arith.mulf %335, %290 : vector<8x16xf32>
    %337 = arith.addf %333, %336 : vector<8x16xf32>
    %338 = arith.addf %288, %337 : vector<8x16xf32>
    %c0_30 = arith.constant 0 : index
    %c2_31 = arith.constant 2 : index
    %c0_32 = arith.constant 0 : index
    %c0_33 = arith.constant 0 : index
    %339 = vector.load %arg5[%c0_30, %c2_31, %c0_32, %c0_33] : memref<1x4x8x16xf32, #tpu.memory_space<vmem>>, vector<1x1x8x16xf32>
    %340 = vector.shape_cast %339 : vector<1x1x8x16xf32> to vector<8x16xf32>
    %341 = vector.extract_strided_slice %6 {offsets = [4, 0], sizes = [1, 16], strides = [1, 1]} : vector<8x16xf32> to vector<1x16xf32>
    %342 = vector.extract_strided_slice %6 {offsets = [5, 0], sizes = [1, 16], strides = [1, 1]} : vector<8x16xf32> to vector<1x16xf32>
    %c1_i32_34 = arith.constant 1 : i32
    %343 = tpu.dynamic_rotate %340 by %c1_i32_34 dim 0 : vector<8x16xf32>, i32 -> vector<8x16xf32>
    %344 = vector.shape_cast %341 : vector<1x16xf32> to vector<1x16xf32>
    %345 = vector.broadcast %344 : vector<1x16xf32> to vector<8x16xf32>
    %346 = arith.select %2, %345, %343 : vector<8x16xi1>, vector<8x16xf32>
    %c7_i32_35 = arith.constant 7 : i32
    %347 = tpu.dynamic_rotate %340 by %c7_i32_35 dim 0 : vector<8x16xf32>, i32 -> vector<8x16xf32>
    %348 = vector.shape_cast %342 : vector<1x16xf32> to vector<1x16xf32>
    %349 = vector.broadcast %348 : vector<1x16xf32> to vector<8x16xf32>
    %350 = arith.select %4, %349, %347 : vector<8x16xi1>, vector<8x16xf32>
    %c1_i32_36 = arith.constant 1 : i32
    %351 = tpu.dynamic_rotate %346 by %c1_i32_36 dim 1 : vector<8x16xf32>, i32 -> vector<8x16xf32>
    %c15_i32_37 = arith.constant 15 : i32
    %352 = tpu.dynamic_rotate %346 by %c15_i32_37 dim 1 : vector<8x16xf32>, i32 -> vector<8x16xf32>
    %c18 = arith.constant 18 : index
    %353 = memref.load %arg2[%c18] : memref<144xf32, #tpu.memory_space<smem>>
    %354 = vector.broadcast %353 : f32 to vector<8x16xf32>
    %355 = arith.mulf %354, %351 : vector<8x16xf32>
    %c19 = arith.constant 19 : index
    %356 = memref.load %arg2[%c19] : memref<144xf32, #tpu.memory_space<smem>>
    %357 = vector.broadcast %356 : f32 to vector<8x16xf32>
    %358 = arith.mulf %357, %346 : vector<8x16xf32>
    %359 = arith.addf %355, %358 : vector<8x16xf32>
    %c20 = arith.constant 20 : index
    %360 = memref.load %arg2[%c20] : memref<144xf32, #tpu.memory_space<smem>>
    %361 = vector.broadcast %360 : f32 to vector<8x16xf32>
    %362 = arith.mulf %361, %352 : vector<8x16xf32>
    %363 = arith.addf %359, %362 : vector<8x16xf32>
    %364 = arith.addf %302, %363 : vector<8x16xf32>
    %c54 = arith.constant 54 : index
    %365 = memref.load %arg2[%c54] : memref<144xf32, #tpu.memory_space<smem>>
    %366 = vector.broadcast %365 : f32 to vector<8x16xf32>
    %367 = arith.mulf %366, %351 : vector<8x16xf32>
    %c55 = arith.constant 55 : index
    %368 = memref.load %arg2[%c55] : memref<144xf32, #tpu.memory_space<smem>>
    %369 = vector.broadcast %368 : f32 to vector<8x16xf32>
    %370 = arith.mulf %369, %346 : vector<8x16xf32>
    %371 = arith.addf %367, %370 : vector<8x16xf32>
    %c56 = arith.constant 56 : index
    %372 = memref.load %arg2[%c56] : memref<144xf32, #tpu.memory_space<smem>>
    %373 = vector.broadcast %372 : f32 to vector<8x16xf32>
    %374 = arith.mulf %373, %352 : vector<8x16xf32>
    %375 = arith.addf %371, %374 : vector<8x16xf32>
    %376 = arith.addf %314, %375 : vector<8x16xf32>
    %c90 = arith.constant 90 : index
    %377 = memref.load %arg2[%c90] : memref<144xf32, #tpu.memory_space<smem>>
    %378 = vector.broadcast %377 : f32 to vector<8x16xf32>
    %379 = arith.mulf %378, %351 : vector<8x16xf32>
    %c91 = arith.constant 91 : index
    %380 = memref.load %arg2[%c91] : memref<144xf32, #tpu.memory_space<smem>>
    %381 = vector.broadcast %380 : f32 to vector<8x16xf32>
    %382 = arith.mulf %381, %346 : vector<8x16xf32>
    %383 = arith.addf %379, %382 : vector<8x16xf32>
    %c92 = arith.constant 92 : index
    %384 = memref.load %arg2[%c92] : memref<144xf32, #tpu.memory_space<smem>>
    %385 = vector.broadcast %384 : f32 to vector<8x16xf32>
    %386 = arith.mulf %385, %352 : vector<8x16xf32>
    %387 = arith.addf %383, %386 : vector<8x16xf32>
    %388 = arith.addf %326, %387 : vector<8x16xf32>
    %c126 = arith.constant 126 : index
    %389 = memref.load %arg2[%c126] : memref<144xf32, #tpu.memory_space<smem>>
    %390 = vector.broadcast %389 : f32 to vector<8x16xf32>
    %391 = arith.mulf %390, %351 : vector<8x16xf32>
    %c127 = arith.constant 127 : index
    %392 = memref.load %arg2[%c127] : memref<144xf32, #tpu.memory_space<smem>>
    %393 = vector.broadcast %392 : f32 to vector<8x16xf32>
    %394 = arith.mulf %393, %346 : vector<8x16xf32>
    %395 = arith.addf %391, %394 : vector<8x16xf32>
    %c128 = arith.constant 128 : index
    %396 = memref.load %arg2[%c128] : memref<144xf32, #tpu.memory_space<smem>>
    %397 = vector.broadcast %396 : f32 to vector<8x16xf32>
    %398 = arith.mulf %397, %352 : vector<8x16xf32>
    %399 = arith.addf %395, %398 : vector<8x16xf32>
    %400 = arith.addf %338, %399 : vector<8x16xf32>
    %c1_i32_38 = arith.constant 1 : i32
    %401 = tpu.dynamic_rotate %340 by %c1_i32_38 dim 1 : vector<8x16xf32>, i32 -> vector<8x16xf32>
    %c15_i32_39 = arith.constant 15 : i32
    %402 = tpu.dynamic_rotate %340 by %c15_i32_39 dim 1 : vector<8x16xf32>, i32 -> vector<8x16xf32>
    %c21 = arith.constant 21 : index
    %403 = memref.load %arg2[%c21] : memref<144xf32, #tpu.memory_space<smem>>
    %404 = vector.broadcast %403 : f32 to vector<8x16xf32>
    %405 = arith.mulf %404, %401 : vector<8x16xf32>
    %c22 = arith.constant 22 : index
    %406 = memref.load %arg2[%c22] : memref<144xf32, #tpu.memory_space<smem>>
    %407 = vector.broadcast %406 : f32 to vector<8x16xf32>
    %408 = arith.mulf %407, %340 : vector<8x16xf32>
    %409 = arith.addf %405, %408 : vector<8x16xf32>
    %c23 = arith.constant 23 : index
    %410 = memref.load %arg2[%c23] : memref<144xf32, #tpu.memory_space<smem>>
    %411 = vector.broadcast %410 : f32 to vector<8x16xf32>
    %412 = arith.mulf %411, %402 : vector<8x16xf32>
    %413 = arith.addf %409, %412 : vector<8x16xf32>
    %414 = arith.addf %364, %413 : vector<8x16xf32>
    %c57 = arith.constant 57 : index
    %415 = memref.load %arg2[%c57] : memref<144xf32, #tpu.memory_space<smem>>
    %416 = vector.broadcast %415 : f32 to vector<8x16xf32>
    %417 = arith.mulf %416, %401 : vector<8x16xf32>
    %c58 = arith.constant 58 : index
    %418 = memref.load %arg2[%c58] : memref<144xf32, #tpu.memory_space<smem>>
    %419 = vector.broadcast %418 : f32 to vector<8x16xf32>
    %420 = arith.mulf %419, %340 : vector<8x16xf32>
    %421 = arith.addf %417, %420 : vector<8x16xf32>
    %c59 = arith.constant 59 : index
    %422 = memref.load %arg2[%c59] : memref<144xf32, #tpu.memory_space<smem>>
    %423 = vector.broadcast %422 : f32 to vector<8x16xf32>
    %424 = arith.mulf %423, %402 : vector<8x16xf32>
    %425 = arith.addf %421, %424 : vector<8x16xf32>
    %426 = arith.addf %376, %425 : vector<8x16xf32>
    %c93 = arith.constant 93 : index
    %427 = memref.load %arg2[%c93] : memref<144xf32, #tpu.memory_space<smem>>
    %428 = vector.broadcast %427 : f32 to vector<8x16xf32>
    %429 = arith.mulf %428, %401 : vector<8x16xf32>
    %c94 = arith.constant 94 : index
    %430 = memref.load %arg2[%c94] : memref<144xf32, #tpu.memory_space<smem>>
    %431 = vector.broadcast %430 : f32 to vector<8x16xf32>
    %432 = arith.mulf %431, %340 : vector<8x16xf32>
    %433 = arith.addf %429, %432 : vector<8x16xf32>
    %c95 = arith.constant 95 : index
    %434 = memref.load %arg2[%c95] : memref<144xf32, #tpu.memory_space<smem>>
    %435 = vector.broadcast %434 : f32 to vector<8x16xf32>
    %436 = arith.mulf %435, %402 : vector<8x16xf32>
    %437 = arith.addf %433, %436 : vector<8x16xf32>
    %438 = arith.addf %388, %437 : vector<8x16xf32>
    %c129 = arith.constant 129 : index
    %439 = memref.load %arg2[%c129] : memref<144xf32, #tpu.memory_space<smem>>
    %440 = vector.broadcast %439 : f32 to vector<8x16xf32>
    %441 = arith.mulf %440, %401 : vector<8x16xf32>
    %c130 = arith.constant 130 : index
    %442 = memref.load %arg2[%c130] : memref<144xf32, #tpu.memory_space<smem>>
    %443 = vector.broadcast %442 : f32 to vector<8x16xf32>
    %444 = arith.mulf %443, %340 : vector<8x16xf32>
    %445 = arith.addf %441, %444 : vector<8x16xf32>
    %c131 = arith.constant 131 : index
    %446 = memref.load %arg2[%c131] : memref<144xf32, #tpu.memory_space<smem>>
    %447 = vector.broadcast %446 : f32 to vector<8x16xf32>
    %448 = arith.mulf %447, %402 : vector<8x16xf32>
    %449 = arith.addf %445, %448 : vector<8x16xf32>
    %450 = arith.addf %400, %449 : vector<8x16xf32>
    %c1_i32_40 = arith.constant 1 : i32
    %451 = tpu.dynamic_rotate %350 by %c1_i32_40 dim 1 : vector<8x16xf32>, i32 -> vector<8x16xf32>
    %c15_i32_41 = arith.constant 15 : i32
    %452 = tpu.dynamic_rotate %350 by %c15_i32_41 dim 1 : vector<8x16xf32>, i32 -> vector<8x16xf32>
    %c24 = arith.constant 24 : index
    %453 = memref.load %arg2[%c24] : memref<144xf32, #tpu.memory_space<smem>>
    %454 = vector.broadcast %453 : f32 to vector<8x16xf32>
    %455 = arith.mulf %454, %451 : vector<8x16xf32>
    %c25 = arith.constant 25 : index
    %456 = memref.load %arg2[%c25] : memref<144xf32, #tpu.memory_space<smem>>
    %457 = vector.broadcast %456 : f32 to vector<8x16xf32>
    %458 = arith.mulf %457, %350 : vector<8x16xf32>
    %459 = arith.addf %455, %458 : vector<8x16xf32>
    %c26 = arith.constant 26 : index
    %460 = memref.load %arg2[%c26] : memref<144xf32, #tpu.memory_space<smem>>
    %461 = vector.broadcast %460 : f32 to vector<8x16xf32>
    %462 = arith.mulf %461, %452 : vector<8x16xf32>
    %463 = arith.addf %459, %462 : vector<8x16xf32>
    %464 = arith.addf %414, %463 : vector<8x16xf32>
    %c60 = arith.constant 60 : index
    %465 = memref.load %arg2[%c60] : memref<144xf32, #tpu.memory_space<smem>>
    %466 = vector.broadcast %465 : f32 to vector<8x16xf32>
    %467 = arith.mulf %466, %451 : vector<8x16xf32>
    %c61 = arith.constant 61 : index
    %468 = memref.load %arg2[%c61] : memref<144xf32, #tpu.memory_space<smem>>
    %469 = vector.broadcast %468 : f32 to vector<8x16xf32>
    %470 = arith.mulf %469, %350 : vector<8x16xf32>
    %471 = arith.addf %467, %470 : vector<8x16xf32>
    %c62 = arith.constant 62 : index
    %472 = memref.load %arg2[%c62] : memref<144xf32, #tpu.memory_space<smem>>
    %473 = vector.broadcast %472 : f32 to vector<8x16xf32>
    %474 = arith.mulf %473, %452 : vector<8x16xf32>
    %475 = arith.addf %471, %474 : vector<8x16xf32>
    %476 = arith.addf %426, %475 : vector<8x16xf32>
    %c96 = arith.constant 96 : index
    %477 = memref.load %arg2[%c96] : memref<144xf32, #tpu.memory_space<smem>>
    %478 = vector.broadcast %477 : f32 to vector<8x16xf32>
    %479 = arith.mulf %478, %451 : vector<8x16xf32>
    %c97 = arith.constant 97 : index
    %480 = memref.load %arg2[%c97] : memref<144xf32, #tpu.memory_space<smem>>
    %481 = vector.broadcast %480 : f32 to vector<8x16xf32>
    %482 = arith.mulf %481, %350 : vector<8x16xf32>
    %483 = arith.addf %479, %482 : vector<8x16xf32>
    %c98 = arith.constant 98 : index
    %484 = memref.load %arg2[%c98] : memref<144xf32, #tpu.memory_space<smem>>
    %485 = vector.broadcast %484 : f32 to vector<8x16xf32>
    %486 = arith.mulf %485, %452 : vector<8x16xf32>
    %487 = arith.addf %483, %486 : vector<8x16xf32>
    %488 = arith.addf %438, %487 : vector<8x16xf32>
    %c132 = arith.constant 132 : index
    %489 = memref.load %arg2[%c132] : memref<144xf32, #tpu.memory_space<smem>>
    %490 = vector.broadcast %489 : f32 to vector<8x16xf32>
    %491 = arith.mulf %490, %451 : vector<8x16xf32>
    %c133 = arith.constant 133 : index
    %492 = memref.load %arg2[%c133] : memref<144xf32, #tpu.memory_space<smem>>
    %493 = vector.broadcast %492 : f32 to vector<8x16xf32>
    %494 = arith.mulf %493, %350 : vector<8x16xf32>
    %495 = arith.addf %491, %494 : vector<8x16xf32>
    %c134 = arith.constant 134 : index
    %496 = memref.load %arg2[%c134] : memref<144xf32, #tpu.memory_space<smem>>
    %497 = vector.broadcast %496 : f32 to vector<8x16xf32>
    %498 = arith.mulf %497, %452 : vector<8x16xf32>
    %499 = arith.addf %495, %498 : vector<8x16xf32>
    %500 = arith.addf %450, %499 : vector<8x16xf32>
    %c0_42 = arith.constant 0 : index
    %c3_43 = arith.constant 3 : index
    %c0_44 = arith.constant 0 : index
    %c0_45 = arith.constant 0 : index
    %501 = vector.load %arg5[%c0_42, %c3_43, %c0_44, %c0_45] : memref<1x4x8x16xf32, #tpu.memory_space<vmem>>, vector<1x1x8x16xf32>
    %502 = vector.shape_cast %501 : vector<1x1x8x16xf32> to vector<8x16xf32>
    %503 = vector.extract_strided_slice %6 {offsets = [6, 0], sizes = [1, 16], strides = [1, 1]} : vector<8x16xf32> to vector<1x16xf32>
    %504 = vector.extract_strided_slice %6 {offsets = [7, 0], sizes = [1, 16], strides = [1, 1]} : vector<8x16xf32> to vector<1x16xf32>
    %c1_i32_46 = arith.constant 1 : i32
    %505 = tpu.dynamic_rotate %502 by %c1_i32_46 dim 0 : vector<8x16xf32>, i32 -> vector<8x16xf32>
    %506 = vector.shape_cast %503 : vector<1x16xf32> to vector<1x16xf32>
    %507 = vector.broadcast %506 : vector<1x16xf32> to vector<8x16xf32>
    %508 = arith.select %2, %507, %505 : vector<8x16xi1>, vector<8x16xf32>
    %c7_i32_47 = arith.constant 7 : i32
    %509 = tpu.dynamic_rotate %502 by %c7_i32_47 dim 0 : vector<8x16xf32>, i32 -> vector<8x16xf32>
    %510 = vector.shape_cast %504 : vector<1x16xf32> to vector<1x16xf32>
    %511 = vector.broadcast %510 : vector<1x16xf32> to vector<8x16xf32>
    %512 = arith.select %4, %511, %509 : vector<8x16xi1>, vector<8x16xf32>
    %c1_i32_48 = arith.constant 1 : i32
    %513 = tpu.dynamic_rotate %508 by %c1_i32_48 dim 1 : vector<8x16xf32>, i32 -> vector<8x16xf32>
    %c15_i32_49 = arith.constant 15 : i32
    %514 = tpu.dynamic_rotate %508 by %c15_i32_49 dim 1 : vector<8x16xf32>, i32 -> vector<8x16xf32>
    %c27 = arith.constant 27 : index
    %515 = memref.load %arg2[%c27] : memref<144xf32, #tpu.memory_space<smem>>
    %516 = vector.broadcast %515 : f32 to vector<8x16xf32>
    %517 = arith.mulf %516, %513 : vector<8x16xf32>
    %c28 = arith.constant 28 : index
    %518 = memref.load %arg2[%c28] : memref<144xf32, #tpu.memory_space<smem>>
    %519 = vector.broadcast %518 : f32 to vector<8x16xf32>
    %520 = arith.mulf %519, %508 : vector<8x16xf32>
    %521 = arith.addf %517, %520 : vector<8x16xf32>
    %c29 = arith.constant 29 : index
    %522 = memref.load %arg2[%c29] : memref<144xf32, #tpu.memory_space<smem>>
    %523 = vector.broadcast %522 : f32 to vector<8x16xf32>
    %524 = arith.mulf %523, %514 : vector<8x16xf32>
    %525 = arith.addf %521, %524 : vector<8x16xf32>
    %526 = arith.addf %464, %525 : vector<8x16xf32>
    %c63 = arith.constant 63 : index
    %527 = memref.load %arg2[%c63] : memref<144xf32, #tpu.memory_space<smem>>
    %528 = vector.broadcast %527 : f32 to vector<8x16xf32>
    %529 = arith.mulf %528, %513 : vector<8x16xf32>
    %c64 = arith.constant 64 : index
    %530 = memref.load %arg2[%c64] : memref<144xf32, #tpu.memory_space<smem>>
    %531 = vector.broadcast %530 : f32 to vector<8x16xf32>
    %532 = arith.mulf %531, %508 : vector<8x16xf32>
    %533 = arith.addf %529, %532 : vector<8x16xf32>
    %c65 = arith.constant 65 : index
    %534 = memref.load %arg2[%c65] : memref<144xf32, #tpu.memory_space<smem>>
    %535 = vector.broadcast %534 : f32 to vector<8x16xf32>
    %536 = arith.mulf %535, %514 : vector<8x16xf32>
    %537 = arith.addf %533, %536 : vector<8x16xf32>
    %538 = arith.addf %476, %537 : vector<8x16xf32>
    %c99 = arith.constant 99 : index
    %539 = memref.load %arg2[%c99] : memref<144xf32, #tpu.memory_space<smem>>
    %540 = vector.broadcast %539 : f32 to vector<8x16xf32>
    %541 = arith.mulf %540, %513 : vector<8x16xf32>
    %c100 = arith.constant 100 : index
    %542 = memref.load %arg2[%c100] : memref<144xf32, #tpu.memory_space<smem>>
    %543 = vector.broadcast %542 : f32 to vector<8x16xf32>
    %544 = arith.mulf %543, %508 : vector<8x16xf32>
    %545 = arith.addf %541, %544 : vector<8x16xf32>
    %c101 = arith.constant 101 : index
    %546 = memref.load %arg2[%c101] : memref<144xf32, #tpu.memory_space<smem>>
    %547 = vector.broadcast %546 : f32 to vector<8x16xf32>
    %548 = arith.mulf %547, %514 : vector<8x16xf32>
    %549 = arith.addf %545, %548 : vector<8x16xf32>
    %550 = arith.addf %488, %549 : vector<8x16xf32>
    %c135 = arith.constant 135 : index
    %551 = memref.load %arg2[%c135] : memref<144xf32, #tpu.memory_space<smem>>
    %552 = vector.broadcast %551 : f32 to vector<8x16xf32>
    %553 = arith.mulf %552, %513 : vector<8x16xf32>
    %c136 = arith.constant 136 : index
    %554 = memref.load %arg2[%c136] : memref<144xf32, #tpu.memory_space<smem>>
    %555 = vector.broadcast %554 : f32 to vector<8x16xf32>
    %556 = arith.mulf %555, %508 : vector<8x16xf32>
    %557 = arith.addf %553, %556 : vector<8x16xf32>
    %c137 = arith.constant 137 : index
    %558 = memref.load %arg2[%c137] : memref<144xf32, #tpu.memory_space<smem>>
    %559 = vector.broadcast %558 : f32 to vector<8x16xf32>
    %560 = arith.mulf %559, %514 : vector<8x16xf32>
    %561 = arith.addf %557, %560 : vector<8x16xf32>
    %562 = arith.addf %500, %561 : vector<8x16xf32>
    %c1_i32_50 = arith.constant 1 : i32
    %563 = tpu.dynamic_rotate %502 by %c1_i32_50 dim 1 : vector<8x16xf32>, i32 -> vector<8x16xf32>
    %c15_i32_51 = arith.constant 15 : i32
    %564 = tpu.dynamic_rotate %502 by %c15_i32_51 dim 1 : vector<8x16xf32>, i32 -> vector<8x16xf32>
    %c30 = arith.constant 30 : index
    %565 = memref.load %arg2[%c30] : memref<144xf32, #tpu.memory_space<smem>>
    %566 = vector.broadcast %565 : f32 to vector<8x16xf32>
    %567 = arith.mulf %566, %563 : vector<8x16xf32>
    %c31 = arith.constant 31 : index
    %568 = memref.load %arg2[%c31] : memref<144xf32, #tpu.memory_space<smem>>
    %569 = vector.broadcast %568 : f32 to vector<8x16xf32>
    %570 = arith.mulf %569, %502 : vector<8x16xf32>
    %571 = arith.addf %567, %570 : vector<8x16xf32>
    %c32 = arith.constant 32 : index
    %572 = memref.load %arg2[%c32] : memref<144xf32, #tpu.memory_space<smem>>
    %573 = vector.broadcast %572 : f32 to vector<8x16xf32>
    %574 = arith.mulf %573, %564 : vector<8x16xf32>
    %575 = arith.addf %571, %574 : vector<8x16xf32>
    %576 = arith.addf %526, %575 : vector<8x16xf32>
    %c66 = arith.constant 66 : index
    %577 = memref.load %arg2[%c66] : memref<144xf32, #tpu.memory_space<smem>>
    %578 = vector.broadcast %577 : f32 to vector<8x16xf32>
    %579 = arith.mulf %578, %563 : vector<8x16xf32>
    %c67 = arith.constant 67 : index
    %580 = memref.load %arg2[%c67] : memref<144xf32, #tpu.memory_space<smem>>
    %581 = vector.broadcast %580 : f32 to vector<8x16xf32>
    %582 = arith.mulf %581, %502 : vector<8x16xf32>
    %583 = arith.addf %579, %582 : vector<8x16xf32>
    %c68 = arith.constant 68 : index
    %584 = memref.load %arg2[%c68] : memref<144xf32, #tpu.memory_space<smem>>
    %585 = vector.broadcast %584 : f32 to vector<8x16xf32>
    %586 = arith.mulf %585, %564 : vector<8x16xf32>
    %587 = arith.addf %583, %586 : vector<8x16xf32>
    %588 = arith.addf %538, %587 : vector<8x16xf32>
    %c102 = arith.constant 102 : index
    %589 = memref.load %arg2[%c102] : memref<144xf32, #tpu.memory_space<smem>>
    %590 = vector.broadcast %589 : f32 to vector<8x16xf32>
    %591 = arith.mulf %590, %563 : vector<8x16xf32>
    %c103 = arith.constant 103 : index
    %592 = memref.load %arg2[%c103] : memref<144xf32, #tpu.memory_space<smem>>
    %593 = vector.broadcast %592 : f32 to vector<8x16xf32>
    %594 = arith.mulf %593, %502 : vector<8x16xf32>
    %595 = arith.addf %591, %594 : vector<8x16xf32>
    %c104 = arith.constant 104 : index
    %596 = memref.load %arg2[%c104] : memref<144xf32, #tpu.memory_space<smem>>
    %597 = vector.broadcast %596 : f32 to vector<8x16xf32>
    %598 = arith.mulf %597, %564 : vector<8x16xf32>
    %599 = arith.addf %595, %598 : vector<8x16xf32>
    %600 = arith.addf %550, %599 : vector<8x16xf32>
    %c138 = arith.constant 138 : index
    %601 = memref.load %arg2[%c138] : memref<144xf32, #tpu.memory_space<smem>>
    %602 = vector.broadcast %601 : f32 to vector<8x16xf32>
    %603 = arith.mulf %602, %563 : vector<8x16xf32>
    %c139 = arith.constant 139 : index
    %604 = memref.load %arg2[%c139] : memref<144xf32, #tpu.memory_space<smem>>
    %605 = vector.broadcast %604 : f32 to vector<8x16xf32>
    %606 = arith.mulf %605, %502 : vector<8x16xf32>
    %607 = arith.addf %603, %606 : vector<8x16xf32>
    %c140 = arith.constant 140 : index
    %608 = memref.load %arg2[%c140] : memref<144xf32, #tpu.memory_space<smem>>
    %609 = vector.broadcast %608 : f32 to vector<8x16xf32>
    %610 = arith.mulf %609, %564 : vector<8x16xf32>
    %611 = arith.addf %607, %610 : vector<8x16xf32>
    %612 = arith.addf %562, %611 : vector<8x16xf32>
    %c1_i32_52 = arith.constant 1 : i32
    %613 = tpu.dynamic_rotate %512 by %c1_i32_52 dim 1 : vector<8x16xf32>, i32 -> vector<8x16xf32>
    %c15_i32_53 = arith.constant 15 : i32
    %614 = tpu.dynamic_rotate %512 by %c15_i32_53 dim 1 : vector<8x16xf32>, i32 -> vector<8x16xf32>
    %c33 = arith.constant 33 : index
    %615 = memref.load %arg2[%c33] : memref<144xf32, #tpu.memory_space<smem>>
    %616 = vector.broadcast %615 : f32 to vector<8x16xf32>
    %617 = arith.mulf %616, %613 : vector<8x16xf32>
    %c34 = arith.constant 34 : index
    %618 = memref.load %arg2[%c34] : memref<144xf32, #tpu.memory_space<smem>>
    %619 = vector.broadcast %618 : f32 to vector<8x16xf32>
    %620 = arith.mulf %619, %512 : vector<8x16xf32>
    %621 = arith.addf %617, %620 : vector<8x16xf32>
    %c35 = arith.constant 35 : index
    %622 = memref.load %arg2[%c35] : memref<144xf32, #tpu.memory_space<smem>>
    %623 = vector.broadcast %622 : f32 to vector<8x16xf32>
    %624 = arith.mulf %623, %614 : vector<8x16xf32>
    %625 = arith.addf %621, %624 : vector<8x16xf32>
    %626 = arith.addf %576, %625 : vector<8x16xf32>
    %c69 = arith.constant 69 : index
    %627 = memref.load %arg2[%c69] : memref<144xf32, #tpu.memory_space<smem>>
    %628 = vector.broadcast %627 : f32 to vector<8x16xf32>
    %629 = arith.mulf %628, %613 : vector<8x16xf32>
    %c70 = arith.constant 70 : index
    %630 = memref.load %arg2[%c70] : memref<144xf32, #tpu.memory_space<smem>>
    %631 = vector.broadcast %630 : f32 to vector<8x16xf32>
    %632 = arith.mulf %631, %512 : vector<8x16xf32>
    %633 = arith.addf %629, %632 : vector<8x16xf32>
    %c71 = arith.constant 71 : index
    %634 = memref.load %arg2[%c71] : memref<144xf32, #tpu.memory_space<smem>>
    %635 = vector.broadcast %634 : f32 to vector<8x16xf32>
    %636 = arith.mulf %635, %614 : vector<8x16xf32>
    %637 = arith.addf %633, %636 : vector<8x16xf32>
    %638 = arith.addf %588, %637 : vector<8x16xf32>
    %c105 = arith.constant 105 : index
    %639 = memref.load %arg2[%c105] : memref<144xf32, #tpu.memory_space<smem>>
    %640 = vector.broadcast %639 : f32 to vector<8x16xf32>
    %641 = arith.mulf %640, %613 : vector<8x16xf32>
    %c106 = arith.constant 106 : index
    %642 = memref.load %arg2[%c106] : memref<144xf32, #tpu.memory_space<smem>>
    %643 = vector.broadcast %642 : f32 to vector<8x16xf32>
    %644 = arith.mulf %643, %512 : vector<8x16xf32>
    %645 = arith.addf %641, %644 : vector<8x16xf32>
    %c107 = arith.constant 107 : index
    %646 = memref.load %arg2[%c107] : memref<144xf32, #tpu.memory_space<smem>>
    %647 = vector.broadcast %646 : f32 to vector<8x16xf32>
    %648 = arith.mulf %647, %614 : vector<8x16xf32>
    %649 = arith.addf %645, %648 : vector<8x16xf32>
    %650 = arith.addf %600, %649 : vector<8x16xf32>
    %c141 = arith.constant 141 : index
    %651 = memref.load %arg2[%c141] : memref<144xf32, #tpu.memory_space<smem>>
    %652 = vector.broadcast %651 : f32 to vector<8x16xf32>
    %653 = arith.mulf %652, %613 : vector<8x16xf32>
    %c142 = arith.constant 142 : index
    %654 = memref.load %arg2[%c142] : memref<144xf32, #tpu.memory_space<smem>>
    %655 = vector.broadcast %654 : f32 to vector<8x16xf32>
    %656 = arith.mulf %655, %512 : vector<8x16xf32>
    %657 = arith.addf %653, %656 : vector<8x16xf32>
    %c143 = arith.constant 143 : index
    %658 = memref.load %arg2[%c143] : memref<144xf32, #tpu.memory_space<smem>>
    %659 = vector.broadcast %658 : f32 to vector<8x16xf32>
    %660 = arith.mulf %659, %614 : vector<8x16xf32>
    %661 = arith.addf %657, %660 : vector<8x16xf32>
    %662 = arith.addf %612, %661 : vector<8x16xf32>
    %cst = arith.constant 0.000000e+00 : f32
    %663 = vector.broadcast %cst : f32 to vector<8x16xf32>
    %664 = arith.maximumf %626, %663 : vector<8x16xf32>
    %c0_54 = arith.constant 0 : index
    %c0_55 = arith.constant 0 : index
    %c0_56 = arith.constant 0 : index
    %c0_57 = arith.constant 0 : index
    %665 = vector.load %arg6[%c0_54, %c0_55, %c0_56, %c0_57] : memref<1x4x8x16xf32, #tpu.memory_space<vmem>>, vector<1x1x8x16xf32>
    %666 = vector.shape_cast %665 : vector<1x1x8x16xf32> to vector<8x16xf32>
    %667 = vector.shape_cast %664 : vector<8x16xf32> to vector<1x1x8x16xf32>
    tpu.vector_store %arg6[%c0_54, %c0_55, %c0_56, %c0_57], %667 {strides = array<i32>} : memref<1x4x8x16xf32, #tpu.memory_space<vmem>>, vector<1x1x8x16xf32>,
    %cst_58 = arith.constant 0.000000e+00 : f32
    %668 = vector.broadcast %cst_58 : f32 to vector<8x16xf32>
    %669 = arith.maximumf %638, %668 : vector<8x16xf32>
    %c0_59 = arith.constant 0 : index
    %c1_60 = arith.constant 1 : index
    %c0_61 = arith.constant 0 : index
    %c0_62 = arith.constant 0 : index
    %670 = vector.load %arg6[%c0_59, %c1_60, %c0_61, %c0_62] : memref<1x4x8x16xf32, #tpu.memory_space<vmem>>, vector<1x1x8x16xf32>
    %671 = vector.shape_cast %670 : vector<1x1x8x16xf32> to vector<8x16xf32>
    %672 = vector.shape_cast %669 : vector<8x16xf32> to vector<1x1x8x16xf32>
    tpu.vector_store %arg6[%c0_59, %c1_60, %c0_61, %c0_62], %672 {strides = array<i32>} : memref<1x4x8x16xf32, #tpu.memory_space<vmem>>, vector<1x1x8x16xf32>,
    %cst_63 = arith.constant 0.000000e+00 : f32
    %673 = vector.broadcast %cst_63 : f32 to vector<8x16xf32>
    %674 = arith.maximumf %650, %673 : vector<8x16xf32>
    %c0_64 = arith.constant 0 : index
    %c2_65 = arith.constant 2 : index
    %c0_66 = arith.constant 0 : index
    %c0_67 = arith.constant 0 : index
    %675 = vector.load %arg6[%c0_64, %c2_65, %c0_66, %c0_67] : memref<1x4x8x16xf32, #tpu.memory_space<vmem>>, vector<1x1x8x16xf32>
    %676 = vector.shape_cast %675 : vector<1x1x8x16xf32> to vector<8x16xf32>
    %677 = vector.shape_cast %674 : vector<8x16xf32> to vector<1x1x8x16xf32>
    tpu.vector_store %arg6[%c0_64, %c2_65, %c0_66, %c0_67], %677 {strides = array<i32>} : memref<1x4x8x16xf32, #tpu.memory_space<vmem>>, vector<1x1x8x16xf32>,
    %cst_68 = arith.constant 0.000000e+00 : f32
    %678 = vector.broadcast %cst_68 : f32 to vector<8x16xf32>
    %679 = arith.maximumf %662, %678 : vector<8x16xf32>
    %c0_69 = arith.constant 0 : index
    %c3_70 = arith.constant 3 : index
    %c0_71 = arith.constant 0 : index
    %c0_72 = arith.constant 0 : index
    %680 = vector.load %arg6[%c0_69, %c3_70, %c0_71, %c0_72] : memref<1x4x8x16xf32, #tpu.memory_space<vmem>>, vector<1x1x8x16xf32>
    %681 = vector.shape_cast %680 : vector<1x1x8x16xf32> to vector<8x16xf32>
    %682 = vector.shape_cast %679 : vector<8x16xf32> to vector<1x1x8x16xf32>
    tpu.vector_store %arg6[%c0_69, %c3_70, %c0_71, %c0_72], %682 {strides = array<i32>} : memref<1x4x8x16xf32, #tpu.memory_space<vmem>>, vector<1x1x8x16xf32>,
    return
  }
  func.func @transform_0(%arg0: i32, %arg1: i32) -> i32 {
    %c0_i32 = arith.constant 0 : i32
    %c0_i32_0 = arith.constant 0 : i32
    return %c0_i32 : i32
  }
  func.func @transform_1(%arg0: i32, %arg1: i32) -> i32 {
    %c0_i32 = arith.constant 0 : i32
    %c0_i32_0 = arith.constant 0 : i32
    return %c0_i32 : i32
  }
  func.func @transform_2(%arg0: i32, %arg1: i32) -> (i32, i32, i32, i32) {
    %c0_i32 = arith.constant 0 : i32
    %c0_i32_0 = arith.constant 0 : i32
    %c0_i32_1 = arith.constant 0 : i32
    return %arg0, %arg1, %c0_i32, %c0_i32_0 : i32, i32, i32, i32
  }
  func.func @transform_3(%arg0: i32, %arg1: i32) -> (i32, i32, i32, i32) {
    %c0_i32 = arith.constant 0 : i32
    %c0_i32_0 = arith.constant 0 : i32
    %c0_i32_1 = arith.constant 0 : i32
    return %arg0, %c0_i32, %arg1, %c0_i32_0 : i32, i32, i32, i32
  }
  func.func @transform_4(%arg0: i32, %arg1: i32) -> (i32, i32, i32, i32) {
    %c0_i32 = arith.constant 0 : i32
    %c0_i32_0 = arith.constant 0 : i32
    %c0_i32_1 = arith.constant 0 : i32
    return %arg0, %c0_i32, %arg1, %c0_i32_0 : i32, i32, i32, i32
  }
}

</mosaic_0001>

<llo_original>
// kernel: tpu_custom_call.1
$region0: #{tpu_custom_call.1}
  #allocation0 [shape = 'u32[]', space=smem, size = 0x4, offset = 0x4, fixed_abs, tag = 'smem constant byte address 0x4 - core index']
  #allocation1 [shape = 'u32[72,128]{1,0:T(1,128)}', space=vmem, size = 0x9000, scoped, tag = 'internal scratch']
  %s0 = inlined_call_operand.hbm [shape: f32[144], index: 0, kind: input, shape index: {}]
  %s1 = inlined_call_operand.hbm [shape: f32[4], index: 1, kind: input, shape index: {}]
  %s2 = inlined_call_operand.hbm [shape: f32[2,2,8,16], index: 2, kind: input, shape index: {}]
  %s3 = inlined_call_operand.hbm [shape: f32[2,4,16,16], index: 3, kind: input, shape index: {}]
  %s4 = inlined_call_operand.hbm [shape: f32[2,4,16,16], index: 4, kind: output, shape index: {}]
  %s5 = sld [smem:[#allocation0]]
  $region65: #{tpu_custom_call.1} parent=0
    _
  %s7 = ssub.s32 1, %s5
  %s8 = scalar_select 0, %s7, %s5
  $region1: #{tpu_custom_call.1} parent=0
    #allocation2 [shape = 'u8[1024]{0}', space=smem, size = 0x400, scoped, tag = 'input window, operand 0, single buffered']
    #allocation3 [shape = 's32[2]{0}', space=sflag, size = 0x8, scoped, tag = 'scoped memory for tpu_custom_call.1']
    #allocation4 [shape = 's32[2]{0}', space=sflag, size = 0x8, scoped, tag = 'scoped memory for tpu_custom_call.1']
    #allocation5 [shape = 's32[2]{0}', space=sflag, size = 0x8, scoped, tag = 'scoped memory for tpu_custom_call.1']
    #allocation6 [shape = 'u8[512]{0}', space=smem, size = 0x200, scoped, tag = 'input window, operand 1, single buffered']
    #allocation7 [shape = 's32[1]{0}', space=sflag, size = 0x4, scoped, tag = 'scoped memory for tpu_custom_call.1']
    #allocation8 [shape = 'u8[8192]{0}', space=vmem, size = 0x2000, scoped, tag = 'input window, operand 2']
    #allocation9 [shape = 'u8[32768]{0}', space=vmem, size = 0x8000, scoped, tag = 'input window, operand 3']
    #allocation10 [shape = 's32[2]{0}', space=sflag, size = 0x8, scoped, tag = 'scoped memory for tpu_custom_call.1']
    #allocation11 [shape = 'u8[32768]{0}', space=vmem, size = 0x8000, scoped, tag = 'output window, operand 0']
    %9 = vsyncpa [#allocation5], 0
    %10 = vsyncpa [#allocation7], 0
    %11 = vsyncpa [#allocation3], 0
    %s12 = scalar_lea.sflag [#allocation3], 1
    %13 = vsyncpa %s12, 0
    %14 = vsyncpa [#allocation10], 0
    %s15 = scalar_lea.sflag [#allocation10], 1
    %16 = vsyncpa %s15, 0
    %17 = vsyncpa [#allocation4], 0
    %s18 = scalar_lea.sflag [#allocation4], 1
    %19 = vsyncpa %s18, 0
    loop: start=0, step=1, limit=6
    $region2: #{tpu_custom_call.1} parent=1 // loop_pre_header
      _
    $region3: #{tpu_custom_call.1} parent=1 // loop_header
      %s21 = sphi 0, %s25
      %p22 = scmp.ge.s32.totalorder %s21, 6
      %s28 = sphi 0, %s40
      %s29 = sphi 0, %s36
      %s30 = sphi 0, %s28
      %s31 = sphi 0, %s29
      %s32 = sphi 0, %s30
      %s33 = sphi 0, %s31
      %s41 = sphi 0, %s41
      %s43 = sphi 0, %s41
      %s44 = sphi 0, %s43
      %s58 = sphi 0, %s44
      %s62 = sphi 0, %s62
      %s64 = sphi 0, %s62
      %s65 = sphi 0, %s64
      %s79 = sphi 0, %s65
      %s87 = sphi 0, %s89
      %s90 = sphi 0, %s87
      %s91 = sphi 0, %s90
      %s107 = sphi 0, %s91
      %s115 = sphi 0, %s117
      %s118 = sphi 0, %s115
      %s119 = sphi 0, %s118
      %s135 = sphi 0, %s119
      %s143 = sphi 0, %s145
      %s146 = sphi 0, %s143
      %s147 = sphi 0, %s146
      %s163 = sphi 0, %s147
    $region4: #{tpu_custom_call.1} parent=1 // loop_header_branch
      %24 = sbr.rel (%p22) target = $region8
    $region5: #{tpu_custom_call.1} parent=1 // loop_body
      %s26 = ssub.s32 %s21, 1
      %s27 = ssub.s32 %s21, 2
      %s34 = sadd.s32 1, %s29
      %p35 = scmp.ge.s32.totalorder %s34, 2
      %s36 = scalar_select %p35, 0, %s34
      %s37 = sadd.s32 1, %s28
      %s38 = scalar_select %p35, %s37, %s28
      %p39 = scmp.ge.s32.totalorder %s38, 2
      %s40 = scalar_select %p39, 0, %s38
      %s42 = sadd.s32 %s41, 1
      %p45 = scmp.eq.s32.totalorder %s21, 3
      %p46 = scmp.ne.s32.totalorder %s41, %s43
      %p47 = scmp.eq.s32.totalorder %s21, 0
      %p48 = por %p46, %p47
      %p49 = scmp.ne.s32.totalorder %s41, %s43
      %p50 = scmp.eq.s32.totalorder %s26, 3
      %p51 = por %p49, %p50
      %p52 = scmp.ne.s32.totalorder %s43, %s44
      %p53 = scmp.eq.s32.totalorder %s26, 0
      %p54 = por %p52, %p53
      %p55 = scmp.ne.s32.totalorder %s43, %s44
      %p56 = scmp.eq.s32.totalorder %s27, 3
      %p57 = por %p55, %p56
      %p59 = scmp.ne.s32.totalorder %s44, %s58
      %p60 = scmp.eq.s32.totalorder %s27, 0
      %p61 = por %p59, %p60
      %s63 = sadd.s32 %s62, 1
      %p66 = scmp.eq.s32.totalorder %s21, 3
      %p67 = scmp.ne.s32.totalorder %s62, %s64
      %p68 = scmp.eq.s32.totalorder %s21, 0
      %p69 = por %p67, %p68
      %p70 = scmp.ne.s32.totalorder %s62, %s64
      %p71 = scmp.eq.s32.totalorder %s26, 3
      %p72 = por %p70, %p71
      %p73 = scmp.ne.s32.totalorder %s64, %s65
      %p74 = scmp.eq.s32.totalorder %s26, 0
      %p75 = por %p73, %p74
      %p76 = scmp.ne.s32.totalorder %s64, %s65
      %p77 = scmp.eq.s32.totalorder %s27, 3
      %p78 = por %p76, %p77
      %p80 = scmp.ne.s32.totalorder %s65, %s79
      %p81 = scmp.eq.s32.totalorder %s27, 0
      %p82 = por %p80, %p81
      %s83 = ssub.s32 %s28, %s40
      %s84 = ssub.s32 %s29, %s36
      %s85 = sor.u32 %s83, %s84
      %p86 = scmp.eq.s32.totalorder %s85, 0
      %s88 = sadd.s32 %s87, 1
      %s89 = scalar_select %p86, %s87, %s88
      %p92 = pneg %p86
      %p93 = scmp.eq.s32.totalorder %s21, 3
      %p94 = por %p92, %p93
      %p95 = scmp.ne.s32.totalorder %s87, %s90
      %p96 = scmp.eq.s32.totalorder %s21, 0
      %p97 = por %p95, %p96
      %p98 = scmp.ne.s32.totalorder %s87, %s90
      %p99 = scmp.eq.s32.totalorder %s26, 3
      %p100 = por %p98, %p99
      %p101 = scmp.ne.s32.totalorder %s90, %s91
      %p102 = scmp.eq.s32.totalorder %s26, 0
      %p103 = por %p101, %p102
      %p104 = scmp.ne.s32.totalorder %s90, %s91
      %p105 = scmp.eq.s32.totalorder %s27, 3
      %p106 = por %p104, %p105
      %p108 = scmp.ne.s32.totalorder %s91, %s107
      %p109 = scmp.eq.s32.totalorder %s27, 0
      %p110 = por %p108, %p109
      %s111 = ssub.s32 %s28, %s40
      %s112 = ssub.s32 %s29, %s36
      %s113 = sor.u32 %s111, %s112
      %p114 = scmp.eq.s32.totalorder %s113, 0
      %s116 = sadd.s32 %s115, 1
      %s117 = scalar_select %p114, %s115, %s116
      %p120 = pneg %p114
      %p121 = scmp.eq.s32.totalorder %s21, 3
      %p122 = por %p120, %p121
      %p123 = scmp.ne.s32.totalorder %s115, %s118
      %p124 = scmp.eq.s32.totalorder %s21, 0
      %p125 = por %p123, %p124
      %p126 = scmp.ne.s32.totalorder %s115, %s118
      %p127 = scmp.eq.s32.totalorder %s26, 3
      %p128 = por %p126, %p127
      %p129 = scmp.ne.s32.totalorder %s118, %s119
      %p130 = scmp.eq.s32.totalorder %s26, 0
      %p131 = por %p129, %p130
      %p132 = scmp.ne.s32.totalorder %s118, %s119
      %p133 = scmp.eq.s32.totalorder %s27, 3
      %p134 = por %p132, %p133
      %p136 = scmp.ne.s32.totalorder %s119, %s135
      %p137 = scmp.eq.s32.totalorder %s27, 0
      %p138 = por %p136, %p137
      %s139 = ssub.s32 %s28, %s40
      %s140 = ssub.s32 %s29, %s36
      %s141 = sor.u32 %s139, %s140
      %p142 = scmp.eq.s32.totalorder %s141, 0
      %s144 = sadd.s32 %s143, 1
      %s145 = scalar_select %p142, %s143, %s144
      %p148 = pneg %p142
      %p149 = scmp.eq.s32.totalorder %s21, 3
      %p150 = por %p148, %p149
      %p151 = scmp.ne.s32.totalorder %s143, %s146
      %p152 = scmp.eq.s32.totalorder %s21, 0
      %p153 = por %p151, %p152
      %p154 = scmp.ne.s32.totalorder %s143, %s146
      %p155 = scmp.eq.s32.totalorder %s26, 3
      %p156 = por %p154, %p155
      %p157 = scmp.ne.s32.totalorder %s146, %s147
      %p158 = scmp.eq.s32.totalorder %s26, 0
      %p159 = por %p157, %p158
      %p160 = scmp.ne.s32.totalorder %s146, %s147
      %p161 = scmp.eq.s32.totalorder %s27, 3
      %p162 = por %p160, %p161
      %p164 = scmp.ne.s32.totalorder %s147, %s163
      %p165 = scmp.eq.s32.totalorder %s27, 0
      %p166 = por %p164, %p165
      %p167 = scmp.le.s32.totalorder 1, %s21
      %p168 = scmp.lt.s32.totalorder %s21, 5
      %p169 = pnand %p167, %p168
      %p170 = pneg %p169
      // Predicated region
      $region9: #{tpu_custom_call.1} parent=5 // pred_check
        _
      $region10: #{tpu_custom_call.1} parent=5 // pred_check_branch
        %172 = sbr.rel (%p169) target = $region12
      $region11: #{tpu_custom_call.1} parent=5 // pred_region
        %s173 = ssub.s32 %s21, 1
        // Predicated region
        $region13: #{tpu_custom_call.1} parent=11 // pred_check
          %p174 = pneg %p54
        $region14: #{tpu_custom_call.1} parent=11 // pred_check_branch
          %176 = sbr.rel (%p174) target = $region16
        $region15: #{tpu_custom_call.1} parent=11 // pred_region
          %178 = vsyncadd [#allocation5], 0
          %s180 = sshll.u32 %s0, 4
          %s181 = int_to_ptr.hbm [resolvable:$true] %s180
          %183 = dma.hbm_to_smem %s181, 32, [#allocation2], [#allocation5]
        $region16: #{tpu_custom_call.1} parent=11 // pred_fallthru
          _
        // Predicated region
        $region17: #{tpu_custom_call.1} parent=11 // pred_check
          %p184 = pneg %p75
        $region18: #{tpu_custom_call.1} parent=11 // pred_check_branch
          %186 = sbr.rel (%p184) target = $region20
        $region19: #{tpu_custom_call.1} parent=11 // pred_region
          %188 = vsyncadd [#allocation7], 0
          %s190 = sshll.u32 %s1, 4
          %s191 = int_to_ptr.hbm [resolvable:$true] %s190
          %193 = dma.hbm_to_smem %s191, 16, [#allocation6], [#allocation7]
        $region20: #{tpu_custom_call.1} parent=11 // pred_fallthru
          _
      $region12: #{tpu_custom_call.1} parent=5 // pred_fallthru
        _
      %p194 = scmp.lt.s32.totalorder %s21, 4
      // Predicated region
      $region21: #{tpu_custom_call.1} parent=5 // pred_check
        %p195 = pneg %p194
      $region22: #{tpu_custom_call.1} parent=5 // pred_check_branch
        %197 = sbr.rel (%p195) target = $region24
      $region23: #{tpu_custom_call.1} parent=5 // pred_region
        // Predicated region
        $region25: #{tpu_custom_call.1} parent=23 // pred_check
          %p198 = pneg %p97
        $region26: #{tpu_custom_call.1} parent=23 // pred_check_branch
          %200 = sbr.rel (%p198) target = $region28
        $region27: #{tpu_custom_call.1} parent=23 // pred_region
          %s201 = sand.u32 %s87, 1
          %s202 = scalar_lea.sflag [#allocation3], %s201
          %s203 = sand.u32 %s87, 1
          %s204 = smul.addr %s203, 8
          %s205 = scalar_lea.vmem [#allocation8], %s204
          %207 = vsyncadd %s202, 0
          %s208 = smul.addr %s28, 2
          %s209 = sadd.s32 %s29, %s208
          %s210 = smul.addr %s209, 8
          %s211 = scalar_lea.hbm %s2, %s210
          %s213 = sshll.u32 %s211, 4
          %s214 = int_to_ptr.hbm [resolvable:$true] %s213
          %s215 = sshll.u32 %s205, 4
          %s216 = int_to_ptr.vmem [resolvable:$true] %s215
          %218 = dma.hbm_to_vmem [thread:$0]  %s214, 128, %s216, %s202
        $region28: #{tpu_custom_call.1} parent=23 // pred_fallthru
          _
        // Predicated region
        $region29: #{tpu_custom_call.1} parent=23 // pred_check
          %p219 = pneg %p125
        $region30: #{tpu_custom_call.1} parent=23 // pred_check_branch
          %221 = sbr.rel (%p219) target = $region32
        $region31: #{tpu_custom_call.1} parent=23 // pred_region
          %s222 = sand.u32 %s115, 1
          %s223 = scalar_lea.sflag [#allocation10], %s222
          %s224 = sand.u32 %s115, 1
          %s225 = smul.addr %s224, 32
          %s226 = scalar_lea.vmem [#allocation9], %s225
          %228 = vsyncadd %s223, 0
          %s229 = smul.addr %s28, 8
          %s230 = sadd.s32 %s29, %s229
          %s231 = smul.addr %s230, 8
          %s232 = scalar_lea.hbm %s3, %s231
          %s233 = sshll.u32 %s232, 4
          %s234 = int_to_ptr.hbm [resolvable:$true] %s233
          %s235 = sshll.u32 %s226, 4
          %s236 = int_to_ptr.vmem [resolvable:$true] %s235
          %241 = dma.hbm_to_vmem [thread:$0]  %s234, 512, %s236, %s223, 256, 128, 8
        $region32: #{tpu_custom_call.1} parent=23 // pred_fallthru
          _
      $region24: #{tpu_custom_call.1} parent=5 // pred_fallthru
        _
      %p242 = scmp.le.s32.totalorder 1, %s21
      %p243 = scmp.lt.s32.totalorder %s21, 5
      %p244 = pnand %p242, %p243
      %p245 = pneg %p244
      // Predicated region
      $region33: #{tpu_custom_call.1} parent=5 // pred_check
        _
      $region34: #{tpu_custom_call.1} parent=5 // pred_check_branch
        %247 = sbr.rel (%p244) target = $region36
      $region35: #{tpu_custom_call.1} parent=5 // pred_region
        %s248 = ssub.s32 %s21, 1
        // Predicated region
        $region37: #{tpu_custom_call.1} parent=35 // pred_check
          %p249 = pneg %p54
        $region38: #{tpu_custom_call.1} parent=35 // pred_check_branch
          %251 = sbr.rel (%p249) target = $region40
        $region39: #{tpu_custom_call.1} parent=35 // pred_region
          %253 = dma.done [#allocation5], 32
        $region40: #{tpu_custom_call.1} parent=35 // pred_fallthru
          _
        // Predicated region
        $region41: #{tpu_custom_call.1} parent=35 // pred_check
          %p254 = pneg %p75
        $region42: #{tpu_custom_call.1} parent=35 // pred_check_branch
          %256 = sbr.rel (%p254) target = $region44
        $region43: #{tpu_custom_call.1} parent=35 // pred_region
          %258 = dma.done [#allocation7], 16
        $region44: #{tpu_custom_call.1} parent=35 // pred_fallthru
          _
        %s259 = sand.u32 %s90, 1
        %s260 = scalar_lea.sflag [#allocation3], %s259
        %s261 = sand.u32 %s90, 1
        %s262 = smul.addr %s261, 8
        %s263 = scalar_lea.vmem [#allocation8], %s262
        // Predicated region
        $region45: #{tpu_custom_call.1} parent=35 // pred_check
          %p264 = pneg %p103
        $region46: #{tpu_custom_call.1} parent=35 // pred_check_branch
          %266 = sbr.rel (%p264) target = $region48
        $region47: #{tpu_custom_call.1} parent=35 // pred_region
          %268 = dma.done %s260, 128
        $region48: #{tpu_custom_call.1} parent=35 // pred_fallthru
          _
        %s269 = sand.u32 %s118, 1
        %s270 = scalar_lea.sflag [#allocation10], %s269
        %s271 = sand.u32 %s118, 1
        %s272 = smul.addr %s271, 32
        %s273 = scalar_lea.vmem [#allocation9], %s272
        // Predicated region
        $region49: #{tpu_custom_call.1} parent=35 // pred_check
          %p274 = pneg %p131
        $region50: #{tpu_custom_call.1} parent=35 // pred_check_branch
          %276 = sbr.rel (%p274) target = $region52
        $region51: #{tpu_custom_call.1} parent=35 // pred_region
          %278 = dma.done %s270, 512
        $region52: #{tpu_custom_call.1} parent=35 // pred_fallthru
          _
        %279 = sfence
        %p280 = pneg %p54
        %p281 = pneg %p51
        %p282 = pneg %p75
        %p283 = pneg %p72
        %s284 = sand.u32 %s90, 1
        %s285 = scalar_lea.sflag [#allocation3], %s284
        %s286 = sand.u32 %s90, 1
        %s287 = smul.addr %s286, 8
        %s288 = scalar_lea.vmem [#allocation8], %s287
        %p289 = pneg %p103
        %p290 = pneg %p100
        %s291 = sand.u32 %s118, 1
        %s292 = scalar_lea.sflag [#allocation10], %s291
        %s293 = sand.u32 %s118, 1
        %s294 = smul.addr %s293, 32
        %s295 = scalar_lea.vmem [#allocation9], %s294
        %p296 = pneg %p131
        %p297 = pneg %p128
        %p298 = pneg %p159
        %p299 = pneg %p156
        %s300 = sand.u32 %s146, 1
        %s301 = scalar_lea.sflag [#allocation4], %s300
        %s302 = sand.u32 %s146, 1
        %s303 = smul.addr %s302, 32
        %s304 = scalar_lea.vmem [#allocation11], %s303
        %v305 = vlaneseq
        %v306 = vshrl.u32 %v305, 7
        %vm307 = vcmp.eq.s32.totalorder %v306, 0
        %vm308 = vcmp.eq.s32.totalorder %v306, 7
        %v309 = vld [vmem:[%s263] sm:$0xff]
        %v310 = vld [vmem:[%s273] sm:$0xff]
        %v311 = vrot.slane %v310, 7
        %v312 = vperm.slane %v309, 0
        %v313 = vsel %vm307, %v312, %v311
        %v314 = vrot.slane %v310, 1
        %v315 = vperm.slane %v309, 1
        %v316 = vsel %vm308, %v315, %v314
        %vm317 = vcmask 1047680
        %318 = vrot.lane.b32.xlu0 %v313, 16
        %v319 = vpop.permute.xlu0 %318
        %v320 = vsel %vm317, %v319, %v313
        %321 = vrot.lane.b32.xlu0 %v320, 16
        %v322 = vpop.permute.xlu0 %321
        %v323 = vsel %vm317, %v322, %v313
        %s324 = sld [smem:[#allocation2]]
        %v325 = vstv %s324
        %v326 = vmul.f32 %v325, %v323
        %s327 = sld [smem:[#allocation2 + $0x1]]
        %v328 = vstv %s327
        %v329 = vmul.f32 %v328, %v313
        %331 = vrot.lane.b32.xlu0 %v329, 15
        %v332 = vpop.permute.xlu0 %331
        %v334 = vadd.f32 %v326, %v332
        %s335 = sld [smem:[#allocation2 + $0x2]]
        %v336 = vstv %s335
        %v337 = vmul.f32 %v336, %v323
        %339 = vrot.lane.b32.xlu0 %v337, 14
        %v340 = vpop.permute.xlu0 %339
        %v342 = vadd.f32 %v334, %v340
        %s343 = sld [smem:[#allocation6]]
        %v344 = vstv %s343
        %v345 = vadd.f32 %v344, %v342
        %s346 = sld [smem:[#allocation2 + $0x24]]
        %v347 = vstv %s346
        %v348 = vmul.f32 %v347, %v323
        %s349 = sld [smem:[#allocation2 + $0x25]]
        %v350 = vstv %s349
        %v351 = vmul.f32 %v350, %v313
        %353 = vrot.lane.b32.xlu0 %v351, 15
        %v354 = vpop.permute.xlu0 %353
        %v356 = vadd.f32 %v348, %v354
        %s357 = sld [smem:[#allocation2 + $0x26]]
        %v358 = vstv %s357
        %v359 = vmul.f32 %v358, %v323
        %361 = vrot.lane.b32.xlu0 %v359, 14
        %v362 = vpop.permute.xlu0 %361
        %v364 = vadd.f32 %v356, %v362
        %s365 = sld [smem:[#allocation6 + $0x1]]
        %v366 = vstv %s365
        %v367 = vadd.f32 %v366, %v364
        %s368 = sld [smem:[#allocation2 + $0x48]]
        %v369 = vstv %s368
        %v370 = vmul.f32 %v369, %v323
        %s371 = sld [smem:[#allocation2 + $0x49]]
        %v372 = vstv %s371
        %v373 = vmul.f32 %v372, %v313
        %375 = vrot.lane.b32.xlu0 %v373, 15
        %v376 = vpop.permute.xlu0 %375
        %v378 = vadd.f32 %v370, %v376
        %s379 = sld [smem:[#allocation2 + $0x4a]]
        %v380 = vstv %s379
        %v381 = vmul.f32 %v380, %v323
        %383 = vrot.lane.b32.xlu0 %v381, 14
        %v384 = vpop.permute.xlu0 %383
        %v386 = vadd.f32 %v378, %v384
        %s387 = sld [smem:[#allocation6 + $0x2]]
        %v388 = vstv %s387
        %v389 = vadd.f32 %v388, %v386
        %s390 = sld [smem:[#allocation2 + $0x6c]]
        %v391 = vstv %s390
        %v392 = vmul.f32 %v391, %v323
        %s393 = sld [smem:[#allocation2 + $0x6d]]
        %v394 = vstv %s393
        %v395 = vmul.f32 %v394, %v313
        %397 = vrot.lane.b32.xlu0 %v395, 15
        %v398 = vpop.permute.xlu0 %397
        %v400 = vadd.f32 %v392, %v398
        %s401 = sld [smem:[#allocation2 + $0x6e]]
        %v402 = vstv %s401
        %v403 = vmul.f32 %v402, %v323
        %405 = vrot.lane.b32.xlu0 %v403, 14
        %v406 = vpop.permute.xlu0 %405
        %v408 = vadd.f32 %v400, %v406
        %s409 = sld [smem:[#allocation6 + $0x3]]
        %v410 = vstv %s409
        %v411 = vadd.f32 %v410, %v408
        %412 = vrot.lane.b32.xlu0 %v310, 16
        %v413 = vpop.permute.xlu0 %412
        %v414 = vsel %vm317, %v413, %v310
        %415 = vrot.lane.b32.xlu0 %v414, 16
        %v416 = vpop.permute.xlu0 %415
        %v417 = vsel %vm317, %v416, %v310
        %s418 = sld [smem:[#allocation2 + $0x3]]
        %v419 = vstv %s418
        %v420 = vmul.f32 %v419, %v417
        %s421 = sld [smem:[#allocation2 + $0x4]]
        %v422 = vstv %s421
        %v423 = vmul.f32 %v422, %v310
        %425 = vrot.lane.b32.xlu0 %v423, 15
        %v426 = vpop.permute.xlu0 %425
        %v428 = vadd.f32 %v420, %v426
        %s429 = sld [smem:[#allocation2 + $0x5]]
        %v430 = vstv %s429
        %v431 = vmul.f32 %v430, %v417
        %433 = vrot.lane.b32.xlu0 %v431, 14
        %v434 = vpop.permute.xlu0 %433
        %v436 = vadd.f32 %v428, %v434
        %v437 = vadd.f32 %v345, %v436
        %s438 = sld [smem:[#allocation2 + $0x27]]
        %v439 = vstv %s438
        %v440 = vmul.f32 %v439, %v417
        %s441 = sld [smem:[#allocation2 + $0x28]]
        %v442 = vstv %s441
        %v443 = vmul.f32 %v442, %v310
        %445 = vrot.lane.b32.xlu0 %v443, 15
        %v446 = vpop.permute.xlu0 %445
        %v448 = vadd.f32 %v440, %v446
        %s449 = sld [smem:[#allocation2 + $0x29]]
        %v450 = vstv %s449
        %v451 = vmul.f32 %v450, %v417
        %453 = vrot.lane.b32.xlu0 %v451, 14
        %v454 = vpop.permute.xlu0 %453
        %v456 = vadd.f32 %v448, %v454
        %v457 = vadd.f32 %v367, %v456
        %s458 = sld [smem:[#allocation2 + $0x4b]]
        %v459 = vstv %s458
        %v460 = vmul.f32 %v459, %v417
        %s461 = sld [smem:[#allocation2 + $0x4c]]
        %v462 = vstv %s461
        %v463 = vmul.f32 %v462, %v310
        %465 = vrot.lane.b32.xlu0 %v463, 15
        %v466 = vpop.permute.xlu0 %465
        %v468 = vadd.f32 %v460, %v466
        %s469 = sld [smem:[#allocation2 + $0x4d]]
        %v470 = vstv %s469
        %v471 = vmul.f32 %v470, %v417
        %473 = vrot.lane.b32.xlu0 %v471, 14
        %v474 = vpop.permute.xlu0 %473
        %v476 = vadd.f32 %v468, %v474
        %v477 = vadd.f32 %v389, %v476
        %s478 = sld [smem:[#allocation2 + $0x6f]]
        %v479 = vstv %s478
        %v480 = vmul.f32 %v479, %v417
        %s481 = sld [smem:[#allocation2 + $0x70]]
        %v482 = vstv %s481
        %v483 = vmul.f32 %v482, %v310
        %485 = vrot.lane.b32.xlu0 %v483, 15
        %v486 = vpop.permute.xlu0 %485
        %v488 = vadd.f32 %v480, %v486
        %s489 = sld [smem:[#allocation2 + $0x71]]
        %v490 = vstv %s489
        %v491 = vmul.f32 %v490, %v417
        %493 = vrot.lane.b32.xlu0 %v491, 14
        %v494 = vpop.permute.xlu0 %493
        %v496 = vadd.f32 %v488, %v494
        %v497 = vadd.f32 %v411, %v496
        %498 = vrot.lane.b32.xlu0 %v316, 16
        %v499 = vpop.permute.xlu0 %498
        %v500 = vsel %vm317, %v499, %v316
        %501 = vrot.lane.b32.xlu0 %v500, 16
        %v502 = vpop.permute.xlu0 %501
        %v503 = vsel %vm317, %v502, %v316
        %s504 = sld [smem:[#allocation2 + $0x6]]
        %v505 = vstv %s504
        %v506 = vmul.f32 %v505, %v503
        %s507 = sld [smem:[#allocation2 + $0x7]]
        %v508 = vstv %s507
        %v509 = vmul.f32 %v508, %v316
        %511 = vrot.lane.b32.xlu0 %v509, 15
        %v512 = vpop.permute.xlu0 %511
        %v514 = vadd.f32 %v506, %v512
        %s515 = sld [smem:[#allocation2 + $0x8]]
        %v516 = vstv %s515
        %v517 = vmul.f32 %v516, %v503
        %519 = vrot.lane.b32.xlu0 %v517, 14
        %v520 = vpop.permute.xlu0 %519
        %v522 = vadd.f32 %v514, %v520
        %v523 = vadd.f32 %v437, %v522
        %s524 = sld [smem:[#allocation2 + $0x2a]]
        %v525 = vstv %s524
        %v526 = vmul.f32 %v525, %v503
        %s527 = sld [smem:[#allocation2 + $0x2b]]
        %v528 = vstv %s527
        %v529 = vmul.f32 %v528, %v316
        %531 = vrot.lane.b32.xlu0 %v529, 15
        %v532 = vpop.permute.xlu0 %531
        %v534 = vadd.f32 %v526, %v532
        %s535 = sld [smem:[#allocation2 + $0x2c]]
        %v536 = vstv %s535
        %v537 = vmul.f32 %v536, %v503
        %539 = vrot.lane.b32.xlu0 %v537, 14
        %v540 = vpop.permute.xlu0 %539
        %v542 = vadd.f32 %v534, %v540
        %v543 = vadd.f32 %v457, %v542
        %s544 = sld [smem:[#allocation2 + $0x4e]]
        %v545 = vstv %s544
        %v546 = vmul.f32 %v545, %v503
        %s547 = sld [smem:[#allocation2 + $0x4f]]
        %v548 = vstv %s547
        %v549 = vmul.f32 %v548, %v316
        %551 = vrot.lane.b32.xlu0 %v549, 15
        %v552 = vpop.permute.xlu0 %551
        %v554 = vadd.f32 %v546, %v552
        %s555 = sld [smem:[#allocation2 + $0x50]]
        %v556 = vstv %s555
        %v557 = vmul.f32 %v556, %v503
        %559 = vrot.lane.b32.xlu0 %v557, 14
        %v560 = vpop.permute.xlu0 %559
        %v562 = vadd.f32 %v554, %v560
        %v563 = vadd.f32 %v477, %v562
        %s564 = sld [smem:[#allocation2 + $0x72]]
        %v565 = vstv %s564
        %v566 = vmul.f32 %v565, %v503
        %s567 = sld [smem:[#allocation2 + $0x73]]
        %v568 = vstv %s567
        %v569 = vmul.f32 %v568, %v316
        %571 = vrot.lane.b32.xlu0 %v569, 15
        %v572 = vpop.permute.xlu0 %571
        %v574 = vadd.f32 %v566, %v572
        %s575 = sld [smem:[#allocation2 + $0x74]]
        %v576 = vstv %s575
        %v577 = vmul.f32 %v576, %v503
        %579 = vrot.lane.b32.xlu0 %v577, 14
        %v580 = vpop.permute.xlu0 %579
        %v582 = vadd.f32 %v574, %v580
        %v583 = vadd.f32 %v497, %v582
        %s584 = scalar_lea.vmem %s273, 8 [#allocation9]
        %v585 = vld [vmem:[%s584] sm:$0xff]
        %v586 = vrot.slane %v585, 7
        %v587 = vperm.slane %v309, 2
        %v588 = vsel %vm307, %v587, %v586
        %v589 = vrot.slane %v585, 1
        %v590 = vperm.slane %v309, 3
        %v591 = vsel %vm308, %v590, %v589
        %592 = vrot.lane.b32.xlu0 %v588, 16
        %v593 = vpop.permute.xlu0 %592
        %v594 = vsel %vm317, %v593, %v588
        %595 = vrot.lane.b32.xlu0 %v594, 16
        %v596 = vpop.permute.xlu0 %595
        %v597 = vsel %vm317, %v596, %v588
        %s598 = sld [smem:[#allocation2 + $0x9]]
        %v599 = vstv %s598
        %v600 = vmul.f32 %v599, %v597
        %s601 = sld [smem:[#allocation2 + $0xa]]
        %v602 = vstv %s601
        %v603 = vmul.f32 %v602, %v588
        %605 = vrot.lane.b32.xlu0 %v603, 15
        %v606 = vpop.permute.xlu0 %605
        %v608 = vadd.f32 %v600, %v606
        %s609 = sld [smem:[#allocation2 + $0xb]]
        %v610 = vstv %s609
        %v611 = vmul.f32 %v610, %v597
        %613 = vrot.lane.b32.xlu0 %v611, 14
        %v614 = vpop.permute.xlu0 %613
        %v616 = vadd.f32 %v608, %v614
        %v617 = vadd.f32 %v523, %v616
        %s618 = sld [smem:[#allocation2 + $0x2d]]
        %v619 = vstv %s618
        %v620 = vmul.f32 %v619, %v597
        %s621 = sld [smem:[#allocation2 + $0x2e]]
        %v622 = vstv %s621
        %v623 = vmul.f32 %v622, %v588
        %625 = vrot.lane.b32.xlu0 %v623, 15
        %v626 = vpop.permute.xlu0 %625
        %v628 = vadd.f32 %v620, %v626
        %s629 = sld [smem:[#allocation2 + $0x2f]]
        %v630 = vstv %s629
        %v631 = vmul.f32 %v630, %v597
        %633 = vrot.lane.b32.xlu0 %v631, 14
        %v634 = vpop.permute.xlu0 %633
        %v636 = vadd.f32 %v628, %v634
        %v637 = vadd.f32 %v543, %v636
        %s638 = sld [smem:[#allocation2 + $0x51]]
        %v639 = vstv %s638
        %v640 = vmul.f32 %v639, %v597
        %s641 = sld [smem:[#allocation2 + $0x52]]
        %v642 = vstv %s641
        %v643 = vmul.f32 %v642, %v588
        %645 = vrot.lane.b32.xlu0 %v643, 15
        %v646 = vpop.permute.xlu0 %645
        %v648 = vadd.f32 %v640, %v646
        %s649 = sld [smem:[#allocation2 + $0x53]]
        %v650 = vstv %s649
        %v651 = vmul.f32 %v650, %v597
        %653 = vrot.lane.b32.xlu0 %v651, 14
        %v654 = vpop.permute.xlu0 %653
        %v656 = vadd.f32 %v648, %v654
        %v657 = vadd.f32 %v563, %v656
        %s658 = sld [smem:[#allocation2 + $0x75]]
        %v659 = vstv %s658
        %v660 = vmul.f32 %v659, %v597
        %s661 = sld [smem:[#allocation2 + $0x76]]
        %v662 = vstv %s661
        %v663 = vmul.f32 %v662, %v588
        %665 = vrot.lane.b32.xlu0 %v663, 15
        %v666 = vpop.permute.xlu0 %665
        %v668 = vadd.f32 %v660, %v666
        %s669 = sld [smem:[#allocation2 + $0x77]]
        %v670 = vstv %s669
        %v671 = vmul.f32 %v670, %v597
        %673 = vrot.lane.b32.xlu0 %v671, 14
        %v674 = vpop.permute.xlu0 %673
        %v676 = vadd.f32 %v668, %v674
        %v677 = vadd.f32 %v583, %v676
        %678 = vrot.lane.b32.xlu0 %v585, 16
        %v679 = vpop.permute.xlu0 %678
        %v680 = vsel %vm317, %v679, %v585
        %681 = vrot.lane.b32.xlu0 %v680, 16
        %v682 = vpop.permute.xlu0 %681
        %v683 = vsel %vm317, %v682, %v585
        %s684 = sld [smem:[#allocation2 + $0xc]]
        %v685 = vstv %s684
        %v686 = vmul.f32 %v685, %v683
        %s687 = sld [smem:[#allocation2 + $0xd]]
        %v688 = vstv %s687
        %v689 = vmul.f32 %v688, %v585
        %691 = vrot.lane.b32.xlu0 %v689, 15
        %v692 = vpop.permute.xlu0 %691
        %v694 = vadd.f32 %v686, %v692
        %s695 = sld [smem:[#allocation2 + $0xe]]
        %v696 = vstv %s695
        %v697 = vmul.f32 %v696, %v683
        %699 = vrot.lane.b32.xlu0 %v697, 14
        %v700 = vpop.permute.xlu0 %699
        %v702 = vadd.f32 %v694, %v700
        %v703 = vadd.f32 %v617, %v702
        %s704 = sld [smem:[#allocation2 + $0x30]]
        %v705 = vstv %s704
        %v706 = vmul.f32 %v705, %v683
        %s707 = sld [smem:[#allocation2 + $0x31]]
        %v708 = vstv %s707
        %v709 = vmul.f32 %v708, %v585
        %711 = vrot.lane.b32.xlu0 %v709, 15
        %v712 = vpop.permute.xlu0 %711
        %v714 = vadd.f32 %v706, %v712
        %s715 = sld [smem:[#allocation2 + $0x32]]
        %v716 = vstv %s715
        %v717 = vmul.f32 %v716, %v683
        %719 = vrot.lane.b32.xlu0 %v717, 14
        %v720 = vpop.permute.xlu0 %719
        %v722 = vadd.f32 %v714, %v720
        %v723 = vadd.f32 %v637, %v722
        %s724 = sld [smem:[#allocation2 + $0x54]]
        %v725 = vstv %s724
        %v726 = vmul.f32 %v725, %v683
        %s727 = sld [smem:[#allocation2 + $0x55]]
        %v728 = vstv %s727
        %v729 = vmul.f32 %v728, %v585
        %731 = vrot.lane.b32.xlu0 %v729, 15
        %v732 = vpop.permute.xlu0 %731
        %v734 = vadd.f32 %v726, %v732
        %s735 = sld [smem:[#allocation2 + $0x56]]
        %v736 = vstv %s735
        %v737 = vmul.f32 %v736, %v683
        %739 = vrot.lane.b32.xlu0 %v737, 14
        %v740 = vpop.permute.xlu0 %739
        %v742 = vadd.f32 %v734, %v740
        %v743 = vadd.f32 %v657, %v742
        %s744 = sld [smem:[#allocation2 + $0x78]]
        %v745 = vstv %s744
        %v746 = vmul.f32 %v745, %v683
        %s747 = sld [smem:[#allocation2 + $0x79]]
        %v748 = vstv %s747
        %v749 = vmul.f32 %v748, %v585
        %751 = vrot.lane.b32.xlu0 %v749, 15
        %v752 = vpop.permute.xlu0 %751
        %v754 = vadd.f32 %v746, %v752
        %s755 = sld [smem:[#allocation2 + $0x7a]]
        %v756 = vstv %s755
        %v757 = vmul.f32 %v756, %v683
        %759 = vrot.lane.b32.xlu0 %v757, 14
        %v760 = vpop.permute.xlu0 %759
        %v762 = vadd.f32 %v754, %v760
        %v763 = vadd.f32 %v677, %v762
        %764 = vrot.lane.b32.xlu0 %v591, 16
        %v765 = vpop.permute.xlu0 %764
        %v766 = vsel %vm317, %v765, %v591
        %767 = vrot.lane.b32.xlu0 %v766, 16
        %v768 = vpop.permute.xlu0 %767
        %v769 = vsel %vm317, %v768, %v591
        %s770 = sld [smem:[#allocation2 + $0xf]]
        %v771 = vstv %s770
        %v772 = vmul.f32 %v771, %v769
        %s773 = sld [smem:[#allocation2 + $0x10]]
        %v774 = vstv %s773
        %v775 = vmul.f32 %v774, %v591
        %777 = vrot.lane.b32.xlu0 %v775, 15
        %v778 = vpop.permute.xlu0 %777
        %v780 = vadd.f32 %v772, %v778
        %s781 = sld [smem:[#allocation2 + $0x11]]
        %v782 = vstv %s781
        %v783 = vmul.f32 %v782, %v769
        %785 = vrot.lane.b32.xlu0 %v783, 14
        %v786 = vpop.permute.xlu0 %785
        %v788 = vadd.f32 %v780, %v786
        %v789 = vadd.f32 %v703, %v788
        %s790 = sld [smem:[#allocation2 + $0x33]]
        %v791 = vstv %s790
        %v792 = vmul.f32 %v791, %v769
        %s793 = sld [smem:[#allocation2 + $0x34]]
        %v794 = vstv %s793
        %v795 = vmul.f32 %v794, %v591
        %797 = vrot.lane.b32.xlu0 %v795, 15
        %v798 = vpop.permute.xlu0 %797
        %v800 = vadd.f32 %v792, %v798
        %s801 = sld [smem:[#allocation2 + $0x35]]
        %v802 = vstv %s801
        %v803 = vmul.f32 %v802, %v769
        %805 = vrot.lane.b32.xlu0 %v803, 14
        %v806 = vpop.permute.xlu0 %805
        %v808 = vadd.f32 %v800, %v806
        %v809 = vadd.f32 %v723, %v808
        %s810 = sld [smem:[#allocation2 + $0x57]]
        %v811 = vstv %s810
        %v812 = vmul.f32 %v811, %v769
        %s813 = sld [smem:[#allocation2 + $0x58]]
        %v814 = vstv %s813
        %v815 = vmul.f32 %v814, %v591
        %817 = vrot.lane.b32.xlu0 %v815, 15
        %v818 = vpop.permute.xlu0 %817
        %v820 = vadd.f32 %v812, %v818
        %s821 = sld [smem:[#allocation2 + $0x59]]
        %v822 = vstv %s821
        %v823 = vmul.f32 %v822, %v769
        %825 = vrot.lane.b32.xlu0 %v823, 14
        %v826 = vpop.permute.xlu0 %825
        %v828 = vadd.f32 %v820, %v826
        %v829 = vadd.f32 %v743, %v828
        %s830 = sld [smem:[#allocation2 + $0x7b]]
        %v831 = vstv %s830
        %v832 = vmul.f32 %v831, %v769
        %s833 = sld [smem:[#allocation2 + $0x7c]]
        %v834 = vstv %s833
        %v835 = vmul.f32 %v834, %v591
        %837 = vrot.lane.b32.xlu0 %v835, 15
        %v838 = vpop.permute.xlu0 %837
        %v840 = vadd.f32 %v832, %v838
        %s841 = sld [smem:[#allocation2 + $0x7d]]
        %v842 = vstv %s841
        %v843 = vmul.f32 %v842, %v769
        %845 = vrot.lane.b32.xlu0 %v843, 14
        %v846 = vpop.permute.xlu0 %845
        %v848 = vadd.f32 %v840, %v846
        %v849 = vadd.f32 %v763, %v848
        %s850 = scalar_lea.vmem %s273, 16 [#allocation9]
        %v851 = vld [vmem:[%s850] sm:$0xff]
        %v852 = vrot.slane %v851, 7
        %v853 = vperm.slane %v309, 4
        %v854 = vsel %vm307, %v853, %v852
        %v855 = vrot.slane %v851, 1
        %v856 = vperm.slane %v309, 5
        %v857 = vsel %vm308, %v856, %v855
        %858 = vrot.lane.b32.xlu0 %v854, 16
        %v859 = vpop.permute.xlu0 %858
        %v860 = vsel %vm317, %v859, %v854
        %861 = vrot.lane.b32.xlu0 %v860, 16
        %v862 = vpop.permute.xlu0 %861
        %v863 = vsel %vm317, %v862, %v854
        %s864 = sld [smem:[#allocation2 + $0x12]]
        %v865 = vstv %s864
        %v866 = vmul.f32 %v865, %v863
        %s867 = sld [smem:[#allocation2 + $0x13]]
        %v868 = vstv %s867
        %v869 = vmul.f32 %v868, %v854
        %871 = vrot.lane.b32.xlu0 %v869, 15
        %v872 = vpop.permute.xlu0 %871
        %v874 = vadd.f32 %v866, %v872
        %s875 = sld [smem:[#allocation2 + $0x14]]
        %v876 = vstv %s875
        %v877 = vmul.f32 %v876, %v863
        %879 = vrot.lane.b32.xlu0 %v877, 14
        %v880 = vpop.permute.xlu0 %879
        %v882 = vadd.f32 %v874, %v880
        %v883 = vadd.f32 %v789, %v882
        %s884 = sld [smem:[#allocation2 + $0x36]]
        %v885 = vstv %s884
        %v886 = vmul.f32 %v885, %v863
        %s887 = sld [smem:[#allocation2 + $0x37]]
        %v888 = vstv %s887
        %v889 = vmul.f32 %v888, %v854
        %891 = vrot.lane.b32.xlu0 %v889, 15
        %v892 = vpop.permute.xlu0 %891
        %v894 = vadd.f32 %v886, %v892
        %s895 = sld [smem:[#allocation2 + $0x38]]
        %v896 = vstv %s895
        %v897 = vmul.f32 %v896, %v863
        %899 = vrot.lane.b32.xlu0 %v897, 14
        %v900 = vpop.permute.xlu0 %899
        %v902 = vadd.f32 %v894, %v900
        %v903 = vadd.f32 %v809, %v902
        %s904 = sld [smem:[#allocation2 + $0x5a]]
        %v905 = vstv %s904
        %v906 = vmul.f32 %v905, %v863
        %s907 = sld [smem:[#allocation2 + $0x5b]]
        %v908 = vstv %s907
        %v909 = vmul.f32 %v908, %v854
        %911 = vrot.lane.b32.xlu0 %v909, 15
        %v912 = vpop.permute.xlu0 %911
        %v914 = vadd.f32 %v906, %v912
        %s915 = sld [smem:[#allocation2 + $0x5c]]
        %v916 = vstv %s915
        %v917 = vmul.f32 %v916, %v863
        %919 = vrot.lane.b32.xlu0 %v917, 14
        %v920 = vpop.permute.xlu0 %919
        %v922 = vadd.f32 %v914, %v920
        %v923 = vadd.f32 %v829, %v922
        %s924 = sld [smem:[#allocation2 + $0x7e]]
        %v925 = vstv %s924
        %v926 = vmul.f32 %v925, %v863
        %s927 = sld [smem:[#allocation2 + $0x7f]]
        %v928 = vstv %s927
        %v929 = vmul.f32 %v928, %v854
        %931 = vrot.lane.b32.xlu0 %v929, 15
        %v932 = vpop.permute.xlu0 %931
        %v934 = vadd.f32 %v926, %v932
        %s935 = sld [smem:[#allocation2 + $0x80]]
        %v936 = vstv %s935
        %v937 = vmul.f32 %v936, %v863
        %939 = vrot.lane.b32.xlu0 %v937, 14
        %v940 = vpop.permute.xlu0 %939
        %v942 = vadd.f32 %v934, %v940
        %v943 = vadd.f32 %v849, %v942
        %944 = vrot.lane.b32.xlu0 %v851, 16
        %v945 = vpop.permute.xlu0 %944
        %v946 = vsel %vm317, %v945, %v851
        %947 = vrot.lane.b32.xlu0 %v946, 16
        %v948 = vpop.permute.xlu0 %947
        %v949 = vsel %vm317, %v948, %v851
        %s950 = sld [smem:[#allocation2 + $0x15]]
        %v951 = vstv %s950
        %v952 = vmul.f32 %v951, %v949
        %s953 = sld [smem:[#allocation2 + $0x16]]
        %v954 = vstv %s953
        %v955 = vmul.f32 %v954, %v851
        %957 = vrot.lane.b32.xlu0 %v955, 15
        %v958 = vpop.permute.xlu0 %957
        %v960 = vadd.f32 %v952, %v958
        %s961 = sld [smem:[#allocation2 + $0x17]]
        %v962 = vstv %s961
        %v963 = vmul.f32 %v962, %v949
        %965 = vrot.lane.b32.xlu0 %v963, 14
        %v966 = vpop.permute.xlu0 %965
        %v968 = vadd.f32 %v960, %v966
        %v969 = vadd.f32 %v883, %v968
        %s970 = sld [smem:[#allocation2 + $0x39]]
        %v971 = vstv %s970
        %v972 = vmul.f32 %v971, %v949
        %s973 = sld [smem:[#allocation2 + $0x3a]]
        %v974 = vstv %s973
        %v975 = vmul.f32 %v974, %v851
        %977 = vrot.lane.b32.xlu0 %v975, 15
        %v978 = vpop.permute.xlu0 %977
        %v980 = vadd.f32 %v972, %v978
        %s981 = sld [smem:[#allocation2 + $0x3b]]
        %v982 = vstv %s981
        %v983 = vmul.f32 %v982, %v949
        %985 = vrot.lane.b32.xlu0 %v983, 14
        %v986 = vpop.permute.xlu0 %985
        %v988 = vadd.f32 %v980, %v986
        %v989 = vadd.f32 %v903, %v988
        %s990 = sld [smem:[#allocation2 + $0x5d]]
        %v991 = vstv %s990
        %v992 = vmul.f32 %v991, %v949
        %s993 = sld [smem:[#allocation2 + $0x5e]]
        %v994 = vstv %s993
        %v995 = vmul.f32 %v994, %v851
        %997 = vrot.lane.b32.xlu0 %v995, 15
        %v998 = vpop.permute.xlu0 %997
        %v1000 = vadd.f32 %v992, %v998
        %s1001 = sld [smem:[#allocation2 + $0x5f]]
        %v1002 = vstv %s1001
        %v1003 = vmul.f32 %v1002, %v949
        %1005 = vrot.lane.b32.xlu0 %v1003, 14
        %v1006 = vpop.permute.xlu0 %1005
        %v1008 = vadd.f32 %v1000, %v1006
        %v1009 = vadd.f32 %v923, %v1008
        %s1010 = sld [smem:[#allocation2 + $0x81]]
        %v1011 = vstv %s1010
        %v1012 = vmul.f32 %v1011, %v949
        %s1013 = sld [smem:[#allocation2 + $0x82]]
        %v1014 = vstv %s1013
        %v1015 = vmul.f32 %v1014, %v851
        %1017 = vrot.lane.b32.xlu0 %v1015, 15
        %v1018 = vpop.permute.xlu0 %1017
        %v1020 = vadd.f32 %v1012, %v1018
        %s1021 = sld [smem:[#allocation2 + $0x83]]
        %v1022 = vstv %s1021
        %v1023 = vmul.f32 %v1022, %v949
        %1025 = vrot.lane.b32.xlu0 %v1023, 14
        %v1026 = vpop.permute.xlu0 %1025
        %v1028 = vadd.f32 %v1020, %v1026
        %v1029 = vadd.f32 %v943, %v1028
        %1030 = vrot.lane.b32.xlu0 %v857, 16
        %v1031 = vpop.permute.xlu0 %1030
        %v1032 = vsel %vm317, %v1031, %v857
        %1033 = vrot.lane.b32.xlu0 %v1032, 16
        %v1034 = vpop.permute.xlu0 %1033
        %v1035 = vsel %vm317, %v1034, %v857
        %s1036 = sld [smem:[#allocation2 + $0x18]]
        %v1037 = vstv %s1036
        %v1038 = vmul.f32 %v1037, %v1035
        %s1039 = sld [smem:[#allocation2 + $0x19]]
        %v1040 = vstv %s1039
        %v1041 = vmul.f32 %v1040, %v857
        %1043 = vrot.lane.b32.xlu0 %v1041, 15
        %v1044 = vpop.permute.xlu0 %1043
        %v1046 = vadd.f32 %v1038, %v1044
        %s1047 = sld [smem:[#allocation2 + $0x1a]]
        %v1048 = vstv %s1047
        %v1049 = vmul.f32 %v1048, %v1035
        %1051 = vrot.lane.b32.xlu0 %v1049, 14
        %v1052 = vpop.permute.xlu0 %1051
        %v1054 = vadd.f32 %v1046, %v1052
        %v1055 = vadd.f32 %v969, %v1054
        %s1056 = sld [smem:[#allocation2 + $0x3c]]
        %v1057 = vstv %s1056
        %v1058 = vmul.f32 %v1057, %v1035
        %s1059 = sld [smem:[#allocation2 + $0x3d]]
        %v1060 = vstv %s1059
        %v1061 = vmul.f32 %v1060, %v857
        %1063 = vrot.lane.b32.xlu0 %v1061, 15
        %v1064 = vpop.permute.xlu0 %1063
        %v1066 = vadd.f32 %v1058, %v1064
        %s1067 = sld [smem:[#allocation2 + $0x3e]]
        %v1068 = vstv %s1067
        %v1069 = vmul.f32 %v1068, %v1035
        %1071 = vrot.lane.b32.xlu0 %v1069, 14
        %v1072 = vpop.permute.xlu0 %1071
        %v1074 = vadd.f32 %v1066, %v1072
        %v1075 = vadd.f32 %v989, %v1074
        %s1076 = sld [smem:[#allocation2 + $0x60]]
        %v1077 = vstv %s1076
        %v1078 = vmul.f32 %v1077, %v1035
        %s1079 = sld [smem:[#allocation2 + $0x61]]
        %v1080 = vstv %s1079
        %v1081 = vmul.f32 %v1080, %v857
        %1083 = vrot.lane.b32.xlu0 %v1081, 15
        %v1084 = vpop.permute.xlu0 %1083
        %v1086 = vadd.f32 %v1078, %v1084
        %s1087 = sld [smem:[#allocation2 + $0x62]]
        %v1088 = vstv %s1087
        %v1089 = vmul.f32 %v1088, %v1035
        %1091 = vrot.lane.b32.xlu0 %v1089, 14
        %v1092 = vpop.permute.xlu0 %1091
        %v1094 = vadd.f32 %v1086, %v1092
        %v1095 = vadd.f32 %v1009, %v1094
        %s1096 = sld [smem:[#allocation2 + $0x84]]
        %v1097 = vstv %s1096
        %v1098 = vmul.f32 %v1097, %v1035
        %s1099 = sld [smem:[#allocation2 + $0x85]]
        %v1100 = vstv %s1099
        %v1101 = vmul.f32 %v1100, %v857
        %1103 = vrot.lane.b32.xlu0 %v1101, 15
        %v1104 = vpop.permute.xlu0 %1103
        %v1106 = vadd.f32 %v1098, %v1104
        %s1107 = sld [smem:[#allocation2 + $0x86]]
        %v1108 = vstv %s1107
        %v1109 = vmul.f32 %v1108, %v1035
        %1111 = vrot.lane.b32.xlu0 %v1109, 14
        %v1112 = vpop.permute.xlu0 %1111
        %v1114 = vadd.f32 %v1106, %v1112
        %v1115 = vadd.f32 %v1029, %v1114
        %s1116 = scalar_lea.vmem %s273, 24 [#allocation9]
        %v1117 = vld [vmem:[%s1116] sm:$0xff]
        %v1118 = vrot.slane %v1117, 7
        %v1119 = vperm.slane %v309, 6
        %v1120 = vsel %vm307, %v1119, %v1118
        %v1121 = vrot.slane %v1117, 1
        %v1122 = vperm.slane %v309, 7
        %v1123 = vsel %vm308, %v1122, %v1121
        %1124 = vrot.lane.b32.xlu0 %v1120, 16
        %v1125 = vpop.permute.xlu0 %1124
        %v1126 = vsel %vm317, %v1125, %v1120
        %1127 = vrot.lane.b32.xlu0 %v1126, 16
        %v1128 = vpop.permute.xlu0 %1127
        %v1129 = vsel %vm317, %v1128, %v1120
        %s1130 = sld [smem:[#allocation2 + $0x1b]]
        %v1131 = vstv %s1130
        %v1132 = vmul.f32 %v1131, %v1129
        %s1133 = sld [smem:[#allocation2 + $0x1c]]
        %v1134 = vstv %s1133
        %v1135 = vmul.f32 %v1134, %v1120
        %1137 = vrot.lane.b32.xlu0 %v1135, 15
        %v1138 = vpop.permute.xlu0 %1137
        %v1140 = vadd.f32 %v1132, %v1138
        %s1141 = sld [smem:[#allocation2 + $0x1d]]
        %v1142 = vstv %s1141
        %v1143 = vmul.f32 %v1142, %v1129
        %1145 = vrot.lane.b32.xlu0 %v1143, 14
        %v1146 = vpop.permute.xlu0 %1145
        %v1148 = vadd.f32 %v1140, %v1146
        %v1149 = vadd.f32 %v1055, %v1148
        %s1150 = sld [smem:[#allocation2 + $0x3f]]
        %v1151 = vstv %s1150
        %v1152 = vmul.f32 %v1151, %v1129
        %s1153 = sld [smem:[#allocation2 + $0x40]]
        %v1154 = vstv %s1153
        %v1155 = vmul.f32 %v1154, %v1120
        %1157 = vrot.lane.b32.xlu0 %v1155, 15
        %v1158 = vpop.permute.xlu0 %1157
        %v1160 = vadd.f32 %v1152, %v1158
        %s1161 = sld [smem:[#allocation2 + $0x41]]
        %v1162 = vstv %s1161
        %v1163 = vmul.f32 %v1162, %v1129
        %1165 = vrot.lane.b32.xlu0 %v1163, 14
        %v1166 = vpop.permute.xlu0 %1165
        %v1168 = vadd.f32 %v1160, %v1166
        %v1169 = vadd.f32 %v1075, %v1168
        %s1170 = sld [smem:[#allocation2 + $0x63]]
        %v1171 = vstv %s1170
        %v1172 = vmul.f32 %v1171, %v1129
        %s1173 = sld [smem:[#allocation2 + $0x64]]
        %v1174 = vstv %s1173
        %v1175 = vmul.f32 %v1174, %v1120
        %1177 = vrot.lane.b32.xlu0 %v1175, 15
        %v1178 = vpop.permute.xlu0 %1177
        %v1180 = vadd.f32 %v1172, %v1178
        %s1181 = sld [smem:[#allocation2 + $0x65]]
        %v1182 = vstv %s1181
        %v1183 = vmul.f32 %v1182, %v1129
        %1185 = vrot.lane.b32.xlu0 %v1183, 14
        %v1186 = vpop.permute.xlu0 %1185
        %v1188 = vadd.f32 %v1180, %v1186
        %v1189 = vadd.f32 %v1095, %v1188
        %s1190 = sld [smem:[#allocation2 + $0x87]]
        %v1191 = vstv %s1190
        %v1192 = vmul.f32 %v1191, %v1129
        %s1193 = sld [smem:[#allocation2 + $0x88]]
        %v1194 = vstv %s1193
        %v1195 = vmul.f32 %v1194, %v1120
        %1197 = vrot.lane.b32.xlu0 %v1195, 15
        %v1198 = vpop.permute.xlu0 %1197
        %v1200 = vadd.f32 %v1192, %v1198
        %s1201 = sld [smem:[#allocation2 + $0x89]]
        %v1202 = vstv %s1201
        %v1203 = vmul.f32 %v1202, %v1129
        %1205 = vrot.lane.b32.xlu0 %v1203, 14
        %v1206 = vpop.permute.xlu0 %1205
        %v1208 = vadd.f32 %v1200, %v1206
        %v1209 = vadd.f32 %v1115, %v1208
        %1210 = vrot.lane.b32.xlu0 %v1117, 16
        %v1211 = vpop.permute.xlu0 %1210
        %v1212 = vsel %vm317, %v1211, %v1117
        %1213 = vrot.lane.b32.xlu0 %v1212, 16
        %v1214 = vpop.permute.xlu0 %1213
        %v1215 = vsel %vm317, %v1214, %v1117
        %s1216 = sld [smem:[#allocation2 + $0x1e]]
        %v1217 = vstv %s1216
        %v1218 = vmul.f32 %v1217, %v1215
        %s1219 = sld [smem:[#allocation2 + $0x1f]]
        %v1220 = vstv %s1219
        %v1221 = vmul.f32 %v1220, %v1117
        %1223 = vrot.lane.b32.xlu0 %v1221, 15
        %v1224 = vpop.permute.xlu0 %1223
        %v1226 = vadd.f32 %v1218, %v1224
        %s1227 = sld [smem:[#allocation2 + $0x20]]
        %v1228 = vstv %s1227
        %v1229 = vmul.f32 %v1228, %v1215
        %1231 = vrot.lane.b32.xlu0 %v1229, 14
        %v1232 = vpop.permute.xlu0 %1231
        %v1234 = vadd.f32 %v1226, %v1232
        %v1235 = vadd.f32 %v1149, %v1234
        %s1236 = sld [smem:[#allocation2 + $0x42]]
        %v1237 = vstv %s1236
        %v1238 = vmul.f32 %v1237, %v1215
        %s1239 = sld [smem:[#allocation2 + $0x43]]
        %v1240 = vstv %s1239
        %v1241 = vmul.f32 %v1240, %v1117
        %1243 = vrot.lane.b32.xlu0 %v1241, 15
        %v1244 = vpop.permute.xlu0 %1243
        %v1246 = vadd.f32 %v1238, %v1244
        %s1247 = sld [smem:[#allocation2 + $0x44]]
        %v1248 = vstv %s1247
        %v1249 = vmul.f32 %v1248, %v1215
        %1251 = vrot.lane.b32.xlu0 %v1249, 14
        %v1252 = vpop.permute.xlu0 %1251
        %v1254 = vadd.f32 %v1246, %v1252
        %v1255 = vadd.f32 %v1169, %v1254
        %s1256 = sld [smem:[#allocation2 + $0x66]]
        %v1257 = vstv %s1256
        %v1258 = vmul.f32 %v1257, %v1215
        %s1259 = sld [smem:[#allocation2 + $0x67]]
        %v1260 = vstv %s1259
        %v1261 = vmul.f32 %v1260, %v1117
        %1263 = vrot.lane.b32.xlu0 %v1261, 15
        %v1264 = vpop.permute.xlu0 %1263
        %v1266 = vadd.f32 %v1258, %v1264
        %s1267 = sld [smem:[#allocation2 + $0x68]]
        %v1268 = vstv %s1267
        %v1269 = vmul.f32 %v1268, %v1215
        %1271 = vrot.lane.b32.xlu0 %v1269, 14
        %v1272 = vpop.permute.xlu0 %1271
        %v1274 = vadd.f32 %v1266, %v1272
        %v1275 = vadd.f32 %v1189, %v1274
        %s1276 = sld [smem:[#allocation2 + $0x8a]]
        %v1277 = vstv %s1276
        %v1278 = vmul.f32 %v1277, %v1215
        %s1279 = sld [smem:[#allocation2 + $0x8b]]
        %v1280 = vstv %s1279
        %v1281 = vmul.f32 %v1280, %v1117
        %1283 = vrot.lane.b32.xlu0 %v1281, 15
        %v1284 = vpop.permute.xlu0 %1283
        %v1286 = vadd.f32 %v1278, %v1284
        %s1287 = sld [smem:[#allocation2 + $0x8c]]
        %v1288 = vstv %s1287
        %v1289 = vmul.f32 %v1288, %v1215
        %1291 = vrot.lane.b32.xlu0 %v1289, 14
        %v1292 = vpop.permute.xlu0 %1291
        %v1294 = vadd.f32 %v1286, %v1292
        %v1295 = vadd.f32 %v1209, %v1294
        %1296 = vrot.lane.b32.xlu0 %v1123, 16
        %v1297 = vpop.permute.xlu0 %1296
        %v1298 = vsel %vm317, %v1297, %v1123
        %1299 = vrot.lane.b32.xlu0 %v1298, 16
        %v1300 = vpop.permute.xlu0 %1299
        %v1301 = vsel %vm317, %v1300, %v1123
        %s1302 = sld [smem:[#allocation2 + $0x21]]
        %v1303 = vstv %s1302
        %v1304 = vmul.f32 %v1303, %v1301
        %s1305 = sld [smem:[#allocation2 + $0x22]]
        %v1306 = vstv %s1305
        %v1307 = vmul.f32 %v1306, %v1123
        %1309 = vrot.lane.b32.xlu0 %v1307, 15
        %v1310 = vpop.permute.xlu0 %1309
        %v1312 = vadd.f32 %v1304, %v1310
        %s1313 = sld [smem:[#allocation2 + $0x23]]
        %v1314 = vstv %s1313
        %v1315 = vmul.f32 %v1314, %v1301
        %1317 = vrot.lane.b32.xlu0 %v1315, 14
        %v1318 = vpop.permute.xlu0 %1317
        %v1320 = vadd.f32 %v1312, %v1318
        %v1321 = vadd.f32 %v1235, %v1320
        %s1322 = sld [smem:[#allocation2 + $0x45]]
        %v1323 = vstv %s1322
        %v1324 = vmul.f32 %v1323, %v1301
        %s1325 = sld [smem:[#allocation2 + $0x46]]
        %v1326 = vstv %s1325
        %v1327 = vmul.f32 %v1326, %v1123
        %1329 = vrot.lane.b32.xlu0 %v1327, 15
        %v1330 = vpop.permute.xlu0 %1329
        %v1332 = vadd.f32 %v1324, %v1330
        %s1333 = sld [smem:[#allocation2 + $0x47]]
        %v1334 = vstv %s1333
        %v1335 = vmul.f32 %v1334, %v1301
        %1337 = vrot.lane.b32.xlu0 %v1335, 14
        %v1338 = vpop.permute.xlu0 %1337
        %v1340 = vadd.f32 %v1332, %v1338
        %v1341 = vadd.f32 %v1255, %v1340
        %s1342 = sld [smem:[#allocation2 + $0x69]]
        %v1343 = vstv %s1342
        %v1344 = vmul.f32 %v1343, %v1301
        %s1345 = sld [smem:[#allocation2 + $0x6a]]
        %v1346 = vstv %s1345
        %v1347 = vmul.f32 %v1346, %v1123
        %1349 = vrot.lane.b32.xlu0 %v1347, 15
        %v1350 = vpop.permute.xlu0 %1349
        %v1352 = vadd.f32 %v1344, %v1350
        %s1353 = sld [smem:[#allocation2 + $0x6b]]
        %v1354 = vstv %s1353
        %v1355 = vmul.f32 %v1354, %v1301
        %1357 = vrot.lane.b32.xlu0 %v1355, 14
        %v1358 = vpop.permute.xlu0 %1357
        %v1360 = vadd.f32 %v1352, %v1358
        %v1361 = vadd.f32 %v1275, %v1360
        %s1362 = sld [smem:[#allocation2 + $0x8d]]
        %v1363 = vstv %s1362
        %v1364 = vmul.f32 %v1363, %v1301
        %s1365 = sld [smem:[#allocation2 + $0x8e]]
        %v1366 = vstv %s1365
        %v1367 = vmul.f32 %v1366, %v1123
        %1369 = vrot.lane.b32.xlu0 %v1367, 15
        %v1370 = vpop.permute.xlu0 %1369
        %v1372 = vadd.f32 %v1364, %v1370
        %s1373 = sld [smem:[#allocation2 + $0x8f]]
        %v1374 = vstv %s1373
        %v1375 = vmul.f32 %v1374, %v1301
        %1377 = vrot.lane.b32.xlu0 %v1375, 14
        %v1378 = vpop.permute.xlu0 %1377
        %v1380 = vadd.f32 %v1372, %v1378
        %v1381 = vadd.f32 %v1295, %v1380
        %v1382 = vmax.f32 %v1321, 0.0
        %1384 = vrot.lane.b32.xlu0 %v1382, 113
        %v1385 = vpop.permute.xlu0 %1384
        %vm1387 = vcmask 130048
        %1388 = vst.msk [vmem:[%s304] sm:$0xff] %vm1387, %v1385
        %v1389 = vmax.f32 %v1341, 0.0
        %1391 = vrot.lane.b32.xlu0 %v1389, 113
        %v1392 = vpop.permute.xlu0 %1391
        %s1394 = scalar_lea.vmem %s304, 8 [#allocation11]
        %1395 = vst.msk [vmem:[%s1394] sm:$0xff] %vm1387, %v1392
        %v1396 = vmax.f32 %v1361, 0.0
        %1398 = vrot.lane.b32.xlu0 %v1396, 113
        %v1399 = vpop.permute.xlu0 %1398
        %s1401 = scalar_lea.vmem %s304, 16 [#allocation11]
        %1402 = vst.msk [vmem:[%s1401] sm:$0xff] %vm1387, %v1399
        %v1403 = vmax.f32 %v1381, 0.0
        %1405 = vrot.lane.b32.xlu0 %v1403, 113
        %v1406 = vpop.permute.xlu0 %1405
        %s1408 = scalar_lea.vmem %s304, 24 [#allocation11]
        %1409 = vst.msk [vmem:[%s1408] sm:$0xff] %vm1387, %v1406
        %s1410 = sand.u32 %s146, 1
        %s1411 = scalar_lea.sflag [#allocation4], %s1410
        %s1412 = sand.u32 %s146, 1
        %s1413 = smul.addr %s1412, 32
        %s1414 = scalar_lea.vmem [#allocation11], %s1413
        // Predicated region
        $region53: #{tpu_custom_call.1} parent=35 // pred_check
          %p1415 = pneg %p156
        $region54: #{tpu_custom_call.1} parent=35 // pred_check_branch
          %1417 = sbr.rel (%p1415) target = $region56
        $region55: #{tpu_custom_call.1} parent=35 // pred_region
          %1419 = vsyncadd %s1411, 0
          %s1420 = smul.addr %s30, 8
          %s1421 = sadd.s32 %s31, %s1420
          %s1422 = smul.addr %s1421, 8
          %s1423 = scalar_lea.hbm %s4, %s1422
          %s1424 = sshll.u32 %s1414, 4
          %s1425 = int_to_ptr.vmem [resolvable:$true] %s1424
          %s1426 = sshll.u32 %s1423, 4
          %s1427 = int_to_ptr.hbm [resolvable:$true] %s1426
          %1432 = dma.vmem_to_hbm [thread:$0]  %s1425, 512, %s1427, %s1411, 128, 256, 8
        $region56: #{tpu_custom_call.1} parent=35 // pred_fallthru
          _
      $region36: #{tpu_custom_call.1} parent=5 // pred_fallthru
        _
      %p1433 = scmp.le.s32.totalorder 2, %s21
      // Predicated region
      $region57: #{tpu_custom_call.1} parent=5 // pred_check
        %p1434 = pneg %p1433
      $region58: #{tpu_custom_call.1} parent=5 // pred_check_branch
        %1436 = sbr.rel (%p1434) target = $region60
      $region59: #{tpu_custom_call.1} parent=5 // pred_region
        %s1437 = ssub.s32 %s21, 2
        // Predicated region
        $region61: #{tpu_custom_call.1} parent=59 // pred_check
          %p1438 = pneg %p162
        $region62: #{tpu_custom_call.1} parent=59 // pred_check_branch
          %1440 = sbr.rel (%p1438) target = $region64
        $region63: #{tpu_custom_call.1} parent=59 // pred_region
          %s1441 = sand.u32 %s147, 1
          %s1442 = scalar_lea.sflag [#allocation4], %s1441
          %s1443 = sand.u32 %s147, 1
          %s1444 = smul.addr %s1443, 32
          %s1445 = scalar_lea.vmem [#allocation11], %s1444
          %1447 = dma.done %s1442, 512
        $region64: #{tpu_custom_call.1} parent=59 // pred_fallthru
          _
      $region60: #{tpu_custom_call.1} parent=5 // pred_fallthru
        _
    $region6: #{tpu_custom_call.1} parent=1 // loop_footer
      %s25 = sadd.s32 1, %s21
    $region7: #{tpu_custom_call.1} parent=1 // loop_footer_branch
      %20 = sbr.rel target = $region3
    $region8: #{tpu_custom_call.1} parent=1 // loop_exit
      _
    %1448 = vsyncpa [#allocation3], 1
    %s1449 = scalar_lea.sflag [#allocation3], 1
    %1450 = vsyncpa %s1449, 1
    %1451 = vsyncpa [#allocation10], 1
    %s1452 = scalar_lea.sflag [#allocation10], 1
    %1453 = vsyncpa %s1452, 1
    %1454 = vsyncpa [#allocation4], 1
    %s1455 = scalar_lea.sflag [#allocation4], 1
    %1456 = vsyncpa %s1455, 1
    %1457 = vsyncpa [#allocation5], 1
    %s1458 = scalar_lea.sflag [#allocation5], 1
    %1459 = vsyncpa %s1458, 1
    %1460 = vsyncpa [#allocation7], 1

</llo_original>
